<compile_context>
chip_gen: v7x
topology: tpu7x:2x2x1
jax: 0.10.0
libtpu: 0.0.40
codegen_flags: <defaults>
</compile_context>

<pallas_src>
import math
import functools
import numpy as np

import jax
import jax.numpy as jnp
from jax import lax
from jax.experimental import pallas as pl
from jax.experimental.pallas import tpu as pltpu


# ----------------------------------------------------------------------------
# Pallas kernels
# ----------------------------------------------------------------------------
def _fused_kernel(cen_ref, sur_ref, wq_ref, wkv_ref, wo_ref, y_ref, *,
                  num_heads, hidden, hid8, inv_sqrt_area):
    """Per-batch fused QKV + attention + output-conv.

    cen_ref : (C, HW)            centre features
    sur_ref : (NH*8*C, HW)       surround differences, rows ordered (ci, h, k)
    wq_ref  : (tra, C)           Q weights, head interleave baked into rows
    wkv_ref : (2*NH*hid8, NH*8C) merged K|V weights, block-diag over heads
    wo_ref  : (NH, out_ch, hidden) output-conv weights, split per head
    y_ref   : (out_ch, HW)       pre-BatchNorm output for this batch element
    """
    cen = cen_ref[...]
    sur = sur_ref[...]

    # All-head Q in one MXU dot (interleave already baked into wq rows).
    q_all = jnp.dot(wq_ref[...], cen, preferred_element_type=jnp.float32)
    # K and V for all heads in one MXU dot against the shared surround slab.
    kv_all = jnp.dot(wkv_ref[...], sur, preferred_element_type=jnp.float32)

    k_base = num_heads * hid8
    y = jnp.zeros(y_ref.shape, jnp.float32)

    for n in range(num_heads):                       # static, unrolled (NH small)
        q = q_all[n * hidden:(n + 1) * hidden]       # (hidden, HW)
        k = kv_all[n * hid8:(n + 1) * hid8]          # (hid8, HW)
        v = kv_all[k_base + n * hid8:k_base + (n + 1) * hid8]

        # F.normalize(dim=-1): x / max(||x||, 1e-12)  ==  x * rsqrt(max(ss,1e-24))
        qn = q * lax.rsqrt(jnp.maximum(jnp.sum(q * q, axis=-1, keepdims=True), 1e-24))
        kn = k * lax.rsqrt(jnp.maximum(jnp.sum(k * k, axis=-1, keepdims=True), 1e-24))

        # scores = qn @ kn^T / sqrt(area)  -> (hidden, hid8)
        s = lax.dot_general(qn, kn, (((1,), (1,)), ((), ())),
                            preferred_element_type=jnp.float32) * inv_sqrt_area

        # InstanceNorm2d (no affine, eps=1e-5): normalize the whole per-head map
        mu = jnp.mean(s)
        var = jnp.mean((s - mu) ** 2)
        s = (s - mu) * lax.rsqrt(var + 1e-5)

        # softmax over the key axis
        s = s - jnp.max(s, axis=-1, keepdims=True)
        e = jnp.exp(s)
        p = e / jnp.sum(e, axis=-1, keepdims=True)

        o = jnp.dot(p, v, preferred_element_type=jnp.float32)      # (hidden, HW)

        # out_conv is linear over the tra rows -> accumulate per-head partials
        y = y + jnp.dot(wo_ref[n], o, preferred_element_type=jnp.float32)

    y_ref[...] = y


def _bn_relu_kernel(y_ref, o_ref):
    # BatchNorm2d in training mode (batch stats, gamma=1, beta=0, eps=1e-5) + ReLU.
    y = y_ref[...]                                   # (B, out_ch, HW)
    mu = jnp.mean(y, axis=(0, 2), keepdims=True)
    var = jnp.mean((y - mu) ** 2, axis=(0, 2), keepdims=True)
    o_ref[...] = jnp.maximum((y - mu) * lax.rsqrt(var + 1e-5), 0.0)


# ----------------------------------------------------------------------------
# Reflection-shift source indices (matches torch feature_padding x0..x7)
# ----------------------------------------------------------------------------
def _reflect_neg(n, d):
    return np.abs(np.arange(n) - d)


def _reflect_pos(n, d):
    t = np.arange(n) + d
    return np.where(t <= n - 1, t, 2 * (n - 1) - t)


def _shift_source_indices(H, W, shifts):
    """(NH, 8, H*W) int32: flattened source pixel for every target pixel."""
    src = np.empty((len(shifts), 8, H * W), np.int32)
    ir, ic = np.arange(H), np.arange(W)
    for hi, d in enumerate(shifts):
        rm, rp = _reflect_neg(H, d), _reflect_pos(H, d)
        cm, cp = _reflect_neg(W, d), _reflect_pos(W, d)
        combos = [(rm, cm), (rm, ic), (rm, cp),
                  (ir, cm), (ir, cp),
                  (rp, cm), (rp, ic), (rp, cp)]
        for k, (ridx, cidx) in enumerate(combos):
            src[hi, k] = (ridx[:, None] * W + cidx[None, :]).reshape(-1)
    return src


# ----------------------------------------------------------------------------
# Parameter init (deterministic, synthetic; matches torch conv weight layouts)
# ----------------------------------------------------------------------------
def init_params(key, in_channels, tra_channels, out_channels, num_heads, num_layer=8):
    hidden = tra_channels // num_heads
    k1, k2, k3, k4 = jax.random.split(key, 4)

    def winit(k, shape, fan_in):
        return jax.random.normal(k, shape, jnp.float32) / np.sqrt(fan_in)

    return dict(
        wq=winit(k1, (num_heads, hidden, in_channels), in_channels),
        wk=winit(k2, (num_heads, hidden * num_layer, in_channels * num_layer),
                 in_channels * num_layer),
        wv=winit(k3, (num_heads, hidden * num_layer, in_channels * num_layer),
                 in_channels * num_layer),
        wo=winit(k4, (out_channels, tra_channels), tra_channels),
    )


# ----------------------------------------------------------------------------
# Forward (Pallas)
# ----------------------------------------------------------------------------
def datrans_forward(params, cen, shifts, width, height):
    B, C, H, W = cen.shape
    NH = len(shifts)
    hidden = params["wq"].shape[1]
    hid8 = params["wk"].shape[1]
    tra = NH * hidden
    out_ch = params["wo"].shape[0]
    HW = H * W
    cen = cen.astype(jnp.float32)
    cen_flat = cen.reshape(B, C, HW)

    # --- surround differences: ONE fused gather over a constant index table ---
    src = _shift_source_indices(H, W, shifts)                    # np (NH, 8, HW)
    shifted = jnp.take(cen_flat, jnp.asarray(src), axis=2)       # (B, C, NH, 8, HW)
    sur_cat = (shifted - cen_flat[:, :, None, None, :]).reshape(B, C * NH * 8, HW)

    # --- bake head interleave + K/V merge into weights (tiny, done once) -----
    # Q: interleaved row f corresponds to (head=f%NH, out_ch=f//NH)
    wq_perm = params["wq"].transpose(1, 0, 2).reshape(tra, C)    # (tra, C)

    eye = jnp.eye(NH, dtype=jnp.float32)

    def _perm_kv(w):
        # w: (NH, hid8, 8C) with input index = k*C + ci
        w_r = w.reshape(NH, hid8, 8, C)                          # (h, o, k, ci)
        t = jnp.einsum("hokc,hg->ohcgk", w_r, eye)               # (o, h, ci, h2, k)
        return t.reshape(NH * hid8, C * NH * 8)                  # rows f=(o,h), cols r=(ci,h2,k)

    wkv_perm = jnp.concatenate([_perm_kv(params["wk"]),
                                _perm_kv(params["wv"])], axis=0)  # (2*NH*hid8, NH*8C)
    wo_r = params["wo"].reshape(out_ch, NH, hidden).transpose(1, 0, 2)  # (NH, out_ch, hidden)

    kernel = functools.partial(
        _fused_kernel, num_heads=NH, hidden=hidden, hid8=hid8,
        inv_sqrt_area=1.0 / math.sqrt(width * height))

    y_pre = pl.pallas_call(
        kernel,
        out_shape=jax.ShapeDtypeStruct((B, out_ch, HW), jnp.float32),
        grid=(B,),
        in_specs=[
            pl.BlockSpec((None, C, HW), lambda b: (b, 0, 0)),
            pl.BlockSpec((None, C * NH * 8, HW), lambda b: (b, 0, 0)),
            pl.BlockSpec((tra, C), lambda b: (0, 0)),
            pl.BlockSpec((2 * NH * hid8, C * NH * 8), lambda b: (0, 0)),
            pl.BlockSpec((NH, out_ch, hidden), lambda b: (0, 0, 0)),
        ],
        out_specs=pl.BlockSpec((None, out_ch, HW), lambda b: (b, 0, 0)),
        compiler_params=pltpu.CompilerParams(dimension_semantics=("parallel",)),
    )(cen_flat, sur_cat, wq_perm, wkv_perm, wo_r)

    # --- BatchNorm (batch stats) + ReLU: needs cross-batch reduction ---------
    y = pl.pallas_call(
        _bn_relu_kernel,
        out_shape=jax.ShapeDtypeStruct((B, out_ch, HW), jnp.float32),
        grid=(1,),
        in_specs=[pl.BlockSpec((B, out_ch, HW), lambda i: (0, 0, 0))],
        out_specs=pl.BlockSpec((B, out_ch, HW), lambda i: (0, 0, 0)),
    )(y_pre)

    return y.reshape(B, out_ch, H, W)


# ----------------------------------------------------------------------------
# Pure-JAX reference (mirrors the torch module op-for-op) for a sanity check
# ----------------------------------------------------------------------------
def build_surrounds(cen, shifts):
    """cen: (B, C, H, W) -> (B, NH, 8*C, H*W), matching torch feature_padding."""
    B, C, H, W = cen.shape
    ident_r, ident_c = np.arange(H), np.arange(W)
    heads = []
    for d in shifts:
        rm, rp = _reflect_neg(H, d), _reflect_pos(H, d)
        cm, cp = _reflect_neg(W, d), _reflect_pos(W, d)
        combos = [(rm, cm), (rm, ident_c), (rm, cp),
                  (ident_r, cm), (ident_r, cp),
                  (rp, cm), (rp, ident_c), (rp, cp)]
        diffs = []
        for ridx, cidx in combos:
            shifted = jnp.take(jnp.take(cen, jnp.asarray(ridx), axis=2),
                               jnp.asarray(cidx), axis=3)
            diffs.append(shifted - cen)
        heads.append(jnp.concatenate(diffs, axis=1).reshape(B, 8 * C, H * W))
    return jnp.stack(heads, axis=1)


def reference_forward(params, cen, shifts, width, height):
    B, C, H, W = cen.shape
    NH = len(shifts)
    hidden = params["wq"].shape[1]
    hid8 = params["wk"].shape[1]
    HW = H * W
    cen = cen.astype(jnp.float32)
    sur = build_surrounds(cen, shifts)
    cen_flat = cen.reshape(B, C, HW)

    q = jnp.einsum("nhc,bcs->bnhs", params["wq"], cen_flat)
    k = jnp.einsum("nkc,bncs->bnks", params["wk"], sur)
    v = jnp.einsum("nkc,bncs->bnks", params["wv"], sur)
    q = q.transpose(0, 2, 1, 3).reshape(B, NH, hidden, HW)
    k = k.transpose(0, 2, 1, 3).reshape(B, NH, hid8, HW)
    v = v.transpose(0, 2, 1, 3).reshape(B, NH, hid8, HW)

    qn = q / jnp.maximum(jnp.linalg.norm(q, axis=-1, keepdims=True), 1e-12)
    kn = k / jnp.maximum(jnp.linalg.norm(k, axis=-1, keepdims=True), 1e-12)
    s = jnp.einsum("bnhs,bnks->bnhk", qn, kn) / math.sqrt(width * height)
    mu = s.mean(axis=(-2, -1), keepdims=True)
    var = ((s - mu) ** 2).mean(axis=(-2, -1), keepdims=True)
    s = (s - mu) / jnp.sqrt(var + 1e-5)
    p = jax.nn.softmax(s, axis=-1)
    o = jnp.einsum("bnhk,bnks->bnhs", p, v).reshape(B, NH * hidden, HW)
    y = jnp.einsum("ot,bts->bos", params["wo"], o)
    mu = y.mean(axis=(0, 2), keepdims=True)
    var = ((y - mu) ** 2).mean(axis=(0, 2), keepdims=True)
    y = jnp.maximum((y - mu) / jnp.sqrt(var + 1e-5), 0.0)
    return y.reshape(B, -1, H, W)


# ----------------------------------------------------------------------------
if __name__ == "__main__":
    B, C, H, W = 2, 4, 16, 16
    out_channels, tra_channels = 8, 16
    shifts = (1, 2)

    key = jax.random.PRNGKey(0)
    kp, kx = jax.random.split(key)
    params = init_params(kp, C, tra_channels, out_channels, len(shifts))
    cen = jax.random.normal(kx, (B, C, H, W), dtype=jnp.float32)

    fwd = jax.jit(functools.partial(datrans_forward, shifts=shifts, width=W, height=H))
    out = jax.block_until_ready(fwd(params, cen))

    ref = reference_forward(params, cen, shifts, W, H)
    assert out.shape == (B, out_channels, H, W)
    err = float(jnp.max(jnp.abs(out - ref)))
    assert err < 2e-3, err

    print("KERNEL_OK")
</pallas_src>

<mosaic_0001>
module attributes {stable_mosaic.version = 11 : i64} {
  func.func @_fused_kernel(%arg0: i32, %arg1: memref<1x4x256xf32, #tpu.memory_space<vmem>>, %arg2: memref<1x64x256xf32, #tpu.memory_space<vmem>>, %arg3: memref<16x4xf32, #tpu.memory_space<vmem>>, %arg4: memref<256x64xf32, #tpu.memory_space<vmem>>, %arg5: memref<2x8x8xf32, #tpu.memory_space<vmem>>, %arg6: memref<1x8x256xf32, #tpu.memory_space<vmem>>) attributes {dimension_semantics = [#tpu.dimension_semantics<parallel>], iteration_bounds = array<i64: 2>, scalar_prefetch = 0 : i64, scratch_operands = 0 : i64, tpu.core_type = #tpu.core_type<tc>, window_params = [{transform_indices = @transform_0, window_bounds = array<i64: 1, 4, 256>}, {transform_indices = @transform_1, window_bounds = array<i64: 1, 64, 256>}, {pipeline_mode = #tpu.pipeline_mode<synchronous>, transform_indices = @transform_2, window_bounds = array<i64: 16, 4>}, {pipeline_mode = #tpu.pipeline_mode<synchronous>, transform_indices = @transform_3, window_bounds = array<i64: 256, 64>}, {pipeline_mode = #tpu.pipeline_mode<synchronous>, transform_indices = @transform_4, window_bounds = array<i64: 2, 8, 8>}, {transform_indices = @transform_5, window_bounds = array<i64: 1, 8, 256>}]} {
    %c0 = arith.constant 0 : index
    %c0_0 = arith.constant 0 : index
    %c0_1 = arith.constant 0 : index
    %0 = vector.load %arg1[%c0, %c0_0, %c0_1] : memref<1x4x256xf32, #tpu.memory_space<vmem>>, vector<1x4x256xf32>
    %1 = vector.shape_cast %0 : vector<1x4x256xf32> to vector<4x256xf32>
    %c0_2 = arith.constant 0 : index
    %c0_3 = arith.constant 0 : index
    %c0_4 = arith.constant 0 : index
    %2 = vector.load %arg2[%c0_2, %c0_3, %c0_4] : memref<1x64x256xf32, #tpu.memory_space<vmem>>, vector<1x64x256xf32>
    %3 = vector.shape_cast %2 : vector<1x64x256xf32> to vector<64x256xf32>
    %c0_5 = arith.constant 0 : index
    %c0_6 = arith.constant 0 : index
    %4 = vector.load %arg3[%c0_5, %c0_6] : memref<16x4xf32, #tpu.memory_space<vmem>>, vector<16x4xf32>
    %cst = arith.constant dense<0.000000e+00> : vector<16x256xf32>
    %5 = tpu.matmul %4, %1, %cst {dimension_numbers = #tpu.dot_dimension_numbers<[1], [0], [0], [1], [0, 0, 1, 1], [], []>} : vector<16x4xf32>, vector<4x256xf32>, vector<16x256xf32> -> vector<16x256xf32>
    %c0_7 = arith.constant 0 : index
    %c0_8 = arith.constant 0 : index
    %6 = vector.load %arg4[%c0_7, %c0_8] : memref<256x64xf32, #tpu.memory_space<vmem>>, vector<256x64xf32>
    %cst_9 = arith.constant dense<0.000000e+00> : vector<256x256xf32>
    %7 = tpu.matmul %6, %3, %cst_9 {dimension_numbers = #tpu.dot_dimension_numbers<[1], [0], [0], [1], [0, 0, 1, 1], [], []>} : vector<256x64xf32>, vector<64x256xf32>, vector<256x256xf32> -> vector<256x256xf32>
    %cst_10 = arith.constant 0.000000e+00 : f32
    %8 = vector.broadcast %cst_10 : f32 to vector<8x256xf32>
    %9 = vector.extract_strided_slice %5 {offsets = [0, 0], sizes = [8, 256], strides = [1, 1]} : vector<16x256xf32> to vector<8x256xf32>
    %10 = vector.extract_strided_slice %7 {offsets = [0, 0], sizes = [64, 256], strides = [1, 1]} : vector<256x256xf32> to vector<64x256xf32>
    %11 = vector.extract_strided_slice %7 {offsets = [128, 0], sizes = [64, 256], strides = [1, 1]} : vector<256x256xf32> to vector<64x256xf32>
    %12 = arith.mulf %9, %9 : vector<8x256xf32>
    %cst_11 = arith.constant dense<0.000000e+00> : vector<8xf32>
    %13 = vector.multi_reduction <add>, %12, %cst_11 [1] : vector<8x256xf32> to vector<8xf32>
    %14 = vector.shape_cast %13 : vector<8xf32> to vector<8x1xf32>
    %cst_12 = arith.constant 1.000000e-24 : f32
    %15 = vector.broadcast %cst_12 : f32 to vector<8x1xf32>
    %16 = arith.maximumf %14, %15 : vector<8x1xf32>
    %17 = math.rsqrt %16 : vector<8x1xf32>
    %18 = vector.broadcast %17 : vector<8x1xf32> to vector<8x256xf32>
    %19 = arith.mulf %9, %18 : vector<8x256xf32>
    %20 = arith.mulf %10, %10 : vector<64x256xf32>
    %cst_13 = arith.constant dense<0.000000e+00> : vector<64xf32>
    %21 = vector.multi_reduction <add>, %20, %cst_13 [1] : vector<64x256xf32> to vector<64xf32>
    %22 = vector.shape_cast %21 : vector<64xf32> to vector<64x1xf32>
    %cst_14 = arith.constant 1.000000e-24 : f32
    %23 = vector.broadcast %cst_14 : f32 to vector<64x1xf32>
    %24 = arith.maximumf %22, %23 : vector<64x1xf32>
    %25 = math.rsqrt %24 : vector<64x1xf32>
    %26 = vector.broadcast %25 : vector<64x1xf32> to vector<64x256xf32>
    %27 = arith.mulf %10, %26 : vector<64x256xf32>
    %cst_15 = arith.constant dense<0.000000e+00> : vector<8x64xf32>
    %28 = tpu.matmul %19, %27, %cst_15 {dimension_numbers = #tpu.dot_dimension_numbers<[1], [1], [0], [0], [0, 0, 1, 0], [], []>} : vector<8x256xf32>, vector<64x256xf32>, vector<8x64xf32> -> vector<8x64xf32>
    %cst_16 = arith.constant 6.250000e-02 : f32
    %29 = vector.broadcast %cst_16 : f32 to vector<8x64xf32>
    %30 = arith.mulf %28, %29 : vector<8x64xf32>
    %31 = vector.shape_cast %30 : vector<8x64xf32> to vector<1x8x64xf32>
    %cst_17 = arith.constant dense<0.000000e+00> : vector<1xf32>
    %32 = vector.multi_reduction <add>, %31, %cst_17 [1, 2] : vector<1x8x64xf32> to vector<1xf32>
    %33 = vector.shape_cast %32 : vector<1xf32> to vector<1x1x1xf32>
    %34 = vector.extract %33[0, 0, 0] : f32 from vector<1x1x1xf32>
    %cst_18 = arith.constant 5.120000e+02 : f32
    %35 = arith.divf %34, %cst_18 : f32
    %36 = vector.broadcast %35 : f32 to vector<8x64xf32>
    %37 = arith.subf %30, %36 : vector<8x64xf32>
    %38 = arith.mulf %37, %37 : vector<8x64xf32>
    %39 = vector.shape_cast %38 : vector<8x64xf32> to vector<1x8x64xf32>
    %cst_19 = arith.constant dense<0.000000e+00> : vector<1xf32>
    %40 = vector.multi_reduction <add>, %39, %cst_19 [1, 2] : vector<1x8x64xf32> to vector<1xf32>
    %41 = vector.shape_cast %40 : vector<1xf32> to vector<1x1x1xf32>
    %42 = vector.extract %41[0, 0, 0] : f32 from vector<1x1x1xf32>
    %cst_20 = arith.constant 5.120000e+02 : f32
    %43 = arith.divf %42, %cst_20 : f32
    %44 = vector.broadcast %35 : f32 to vector<8x64xf32>
    %45 = arith.subf %30, %44 : vector<8x64xf32>
    %cst_21 = arith.constant 9.99999974E-6 : f32
    %46 = arith.addf %43, %cst_21 : f32
    %47 = math.rsqrt %46 : f32
    %48 = vector.broadcast %47 : f32 to vector<8x64xf32>
    %49 = arith.mulf %45, %48 : vector<8x64xf32>
    %cst_22 = arith.constant dense<0xFF800000> : vector<8xf32>
    %50 = vector.multi_reduction <maximumf>, %49, %cst_22 [1] : vector<8x64xf32> to vector<8xf32>
    %51 = vector.shape_cast %50 : vector<8xf32> to vector<8x1xf32>
    %52 = vector.broadcast %51 : vector<8x1xf32> to vector<8x64xf32>
    %53 = arith.subf %49, %52 : vector<8x64xf32>
    %54 = math.exp %53 : vector<8x64xf32>
    %cst_23 = arith.constant dense<0.000000e+00> : vector<8xf32>
    %55 = vector.multi_reduction <add>, %54, %cst_23 [1] : vector<8x64xf32> to vector<8xf32>
    %56 = vector.shape_cast %55 : vector<8xf32> to vector<8x1xf32>
    %57 = vector.broadcast %56 : vector<8x1xf32> to vector<8x64xf32>
    %58 = arith.divf %54, %57 : vector<8x64xf32>
    %cst_24 = arith.constant dense<0.000000e+00> : vector<8x256xf32>
    %59 = tpu.matmul %58, %11, %cst_24 {dimension_numbers = #tpu.dot_dimension_numbers<[1], [0], [0], [1], [0, 0, 1, 1], [], []>} : vector<8x64xf32>, vector<64x256xf32>, vector<8x256xf32> -> vector<8x256xf32>
    %c0_25 = arith.constant 0 : index
    %c0_26 = arith.constant 0 : index
    %c0_27 = arith.constant 0 : index
    %60 = vector.load %arg5[%c0_25, %c0_26, %c0_27] : memref<2x8x8xf32, #tpu.memory_space<vmem>>, vector<1x8x8xf32>
    %61 = vector.shape_cast %60 : vector<1x8x8xf32> to vector<8x8xf32>
    %cst_28 = arith.constant dense<0.000000e+00> : vector<8x256xf32>
    %62 = tpu.matmul %61, %59, %cst_28 {dimension_numbers = #tpu.dot_dimension_numbers<[1], [0], [0], [1], [0, 0, 1, 1], [], []>} : vector<8x8xf32>, vector<8x256xf32>, vector<8x256xf32> -> vector<8x256xf32>
    %63 = arith.addf %8, %62 : vector<8x256xf32>
    %64 = vector.extract_strided_slice %5 {offsets = [8, 0], sizes = [8, 256], strides = [1, 1]} : vector<16x256xf32> to vector<8x256xf32>
    %65 = vector.extract_strided_slice %7 {offsets = [64, 0], sizes = [64, 256], strides = [1, 1]} : vector<256x256xf32> to vector<64x256xf32>
    %66 = vector.extract_strided_slice %7 {offsets = [192, 0], sizes = [64, 256], strides = [1, 1]} : vector<256x256xf32> to vector<64x256xf32>
    %67 = arith.mulf %64, %64 : vector<8x256xf32>
    %cst_29 = arith.constant dense<0.000000e+00> : vector<8xf32>
    %68 = vector.multi_reduction <add>, %67, %cst_29 [1] : vector<8x256xf32> to vector<8xf32>
    %69 = vector.shape_cast %68 : vector<8xf32> to vector<8x1xf32>
    %cst_30 = arith.constant 1.000000e-24 : f32
    %70 = vector.broadcast %cst_30 : f32 to vector<8x1xf32>
    %71 = arith.maximumf %69, %70 : vector<8x1xf32>
    %72 = math.rsqrt %71 : vector<8x1xf32>
    %73 = vector.broadcast %72 : vector<8x1xf32> to vector<8x256xf32>
    %74 = arith.mulf %64, %73 : vector<8x256xf32>
    %75 = arith.mulf %65, %65 : vector<64x256xf32>
    %cst_31 = arith.constant dense<0.000000e+00> : vector<64xf32>
    %76 = vector.multi_reduction <add>, %75, %cst_31 [1] : vector<64x256xf32> to vector<64xf32>
    %77 = vector.shape_cast %76 : vector<64xf32> to vector<64x1xf32>
    %cst_32 = arith.constant 1.000000e-24 : f32
    %78 = vector.broadcast %cst_32 : f32 to vector<64x1xf32>
    %79 = arith.maximumf %77, %78 : vector<64x1xf32>
    %80 = math.rsqrt %79 : vector<64x1xf32>
    %81 = vector.broadcast %80 : vector<64x1xf32> to vector<64x256xf32>
    %82 = arith.mulf %65, %81 : vector<64x256xf32>
    %cst_33 = arith.constant dense<0.000000e+00> : vector<8x64xf32>
    %83 = tpu.matmul %74, %82, %cst_33 {dimension_numbers = #tpu.dot_dimension_numbers<[1], [1], [0], [0], [0, 0, 1, 0], [], []>} : vector<8x256xf32>, vector<64x256xf32>, vector<8x64xf32> -> vector<8x64xf32>
    %cst_34 = arith.constant 6.250000e-02 : f32
    %84 = vector.broadcast %cst_34 : f32 to vector<8x64xf32>
    %85 = arith.mulf %83, %84 : vector<8x64xf32>
    %86 = vector.shape_cast %85 : vector<8x64xf32> to vector<1x8x64xf32>
    %cst_35 = arith.constant dense<0.000000e+00> : vector<1xf32>
    %87 = vector.multi_reduction <add>, %86, %cst_35 [1, 2] : vector<1x8x64xf32> to vector<1xf32>
    %88 = vector.shape_cast %87 : vector<1xf32> to vector<1x1x1xf32>
    %89 = vector.extract %88[0, 0, 0] : f32 from vector<1x1x1xf32>
    %cst_36 = arith.constant 5.120000e+02 : f32
    %90 = arith.divf %89, %cst_36 : f32
    %91 = vector.broadcast %90 : f32 to vector<8x64xf32>
    %92 = arith.subf %85, %91 : vector<8x64xf32>
    %93 = arith.mulf %92, %92 : vector<8x64xf32>
    %94 = vector.shape_cast %93 : vector<8x64xf32> to vector<1x8x64xf32>
    %cst_37 = arith.constant dense<0.000000e+00> : vector<1xf32>
    %95 = vector.multi_reduction <add>, %94, %cst_37 [1, 2] : vector<1x8x64xf32> to vector<1xf32>
    %96 = vector.shape_cast %95 : vector<1xf32> to vector<1x1x1xf32>
    %97 = vector.extract %96[0, 0, 0] : f32 from vector<1x1x1xf32>
    %cst_38 = arith.constant 5.120000e+02 : f32
    %98 = arith.divf %97, %cst_38 : f32
    %99 = vector.broadcast %90 : f32 to vector<8x64xf32>
    %100 = arith.subf %85, %99 : vector<8x64xf32>
    %cst_39 = arith.constant 9.99999974E-6 : f32
    %101 = arith.addf %98, %cst_39 : f32
    %102 = math.rsqrt %101 : f32
    %103 = vector.broadcast %102 : f32 to vector<8x64xf32>
    %104 = arith.mulf %100, %103 : vector<8x64xf32>
    %cst_40 = arith.constant dense<0xFF800000> : vector<8xf32>
    %105 = vector.multi_reduction <maximumf>, %104, %cst_40 [1] : vector<8x64xf32> to vector<8xf32>
    %106 = vector.shape_cast %105 : vector<8xf32> to vector<8x1xf32>
    %107 = vector.broadcast %106 : vector<8x1xf32> to vector<8x64xf32>
    %108 = arith.subf %104, %107 : vector<8x64xf32>
    %109 = math.exp %108 : vector<8x64xf32>
    %cst_41 = arith.constant dense<0.000000e+00> : vector<8xf32>
    %110 = vector.multi_reduction <add>, %109, %cst_41 [1] : vector<8x64xf32> to vector<8xf32>
    %111 = vector.shape_cast %110 : vector<8xf32> to vector<8x1xf32>
    %112 = vector.broadcast %111 : vector<8x1xf32> to vector<8x64xf32>
    %113 = arith.divf %109, %112 : vector<8x64xf32>
    %cst_42 = arith.constant dense<0.000000e+00> : vector<8x256xf32>
    %114 = tpu.matmul %113, %66, %cst_42 {dimension_numbers = #tpu.dot_dimension_numbers<[1], [0], [0], [1], [0, 0, 1, 1], [], []>} : vector<8x64xf32>, vector<64x256xf32>, vector<8x256xf32> -> vector<8x256xf32>
    %c1 = arith.constant 1 : index
    %c0_43 = arith.constant 0 : index
    %c0_44 = arith.constant 0 : index
    %115 = vector.load %arg5[%c1, %c0_43, %c0_44] : memref<2x8x8xf32, #tpu.memory_space<vmem>>, vector<1x8x8xf32>
    %116 = vector.shape_cast %115 : vector<1x8x8xf32> to vector<8x8xf32>
    %cst_45 = arith.constant dense<0.000000e+00> : vector<8x256xf32>
    %117 = tpu.matmul %116, %114, %cst_45 {dimension_numbers = #tpu.dot_dimension_numbers<[1], [0], [0], [1], [0, 0, 1, 1], [], []>} : vector<8x8xf32>, vector<8x256xf32>, vector<8x256xf32> -> vector<8x256xf32>
    %118 = arith.addf %63, %117 : vector<8x256xf32>
    %c0_46 = arith.constant 0 : index
    %c0_47 = arith.constant 0 : index
    %c0_48 = arith.constant 0 : index
    %119 = vector.load %arg6[%c0_46, %c0_47, %c0_48] : memref<1x8x256xf32, #tpu.memory_space<vmem>>, vector<1x8x256xf32>
    %120 = vector.shape_cast %119 : vector<1x8x256xf32> to vector<8x256xf32>
    %121 = vector.shape_cast %118 : vector<8x256xf32> to vector<1x8x256xf32>
    tpu.vector_store %arg6[%c0_46, %c0_47, %c0_48], %121 {strides = array<i32>} : memref<1x8x256xf32, #tpu.memory_space<vmem>>, vector<1x8x256xf32>,
    return
  }
  func.func @transform_0(%arg0: i32) -> (i32, i32, i32) {
    %c0_i32 = arith.constant 0 : i32
    %c0_i32_0 = arith.constant 0 : i32
    %c0_i32_1 = arith.constant 0 : i32
    return %arg0, %c0_i32, %c0_i32_0 : i32, i32, i32
  }
  func.func @transform_1(%arg0: i32) -> (i32, i32, i32) {
    %c0_i32 = arith.constant 0 : i32
    %c0_i32_0 = arith.constant 0 : i32
    %c0_i32_1 = arith.constant 0 : i32
    return %arg0, %c0_i32, %c0_i32_0 : i32, i32, i32
  }
  func.func @transform_2(%arg0: i32) -> (i32, i32) {
    %c0_i32 = arith.constant 0 : i32
    %c0_i32_0 = arith.constant 0 : i32
    %c0_i32_1 = arith.constant 0 : i32
    return %c0_i32, %c0_i32_0 : i32, i32
  }
  func.func @transform_3(%arg0: i32) -> (i32, i32) {
    %c0_i32 = arith.constant 0 : i32
    %c0_i32_0 = arith.constant 0 : i32
    %c0_i32_1 = arith.constant 0 : i32
    return %c0_i32, %c0_i32_0 : i32, i32
  }
  func.func @transform_4(%arg0: i32) -> (i32, i32, i32) {
    %c0_i32 = arith.constant 0 : i32
    %c0_i32_0 = arith.constant 0 : i32
    %c0_i32_1 = arith.constant 0 : i32
    %c0_i32_2 = arith.constant 0 : i32
    return %c0_i32, %c0_i32_0, %c0_i32_1 : i32, i32, i32
  }
  func.func @transform_5(%arg0: i32) -> (i32, i32, i32) {
    %c0_i32 = arith.constant 0 : i32
    %c0_i32_0 = arith.constant 0 : i32
    %c0_i32_1 = arith.constant 0 : i32
    return %arg0, %c0_i32, %c0_i32_0 : i32, i32, i32
  }
}

module attributes {stable_mosaic.version = 11 : i64} {
  func.func @_bn_relu_kernel(%arg0: i32, %arg1: memref<2x8x256xf32, #tpu.memory_space<vmem>>, %arg2: memref<2x8x256xf32, #tpu.memory_space<vmem>>) attributes {dimension_semantics = [#tpu.dimension_semantics<arbitrary>], iteration_bounds = array<i64: 1>, scalar_prefetch = 0 : i64, scratch_operands = 0 : i64, tpu.core_type = #tpu.core_type<tc>, window_params = [{pipeline_mode = #tpu.pipeline_mode<synchronous>, transform_indices = @transform_0, window_bounds = array<i64: 2, 8, 256>}, {pipeline_mode = #tpu.pipeline_mode<synchronous>, transform_indices = @transform_1, window_bounds = array<i64: 2, 8, 256>}]} {
    %c0 = arith.constant 0 : index
    %c0_0 = arith.constant 0 : index
    %c0_1 = arith.constant 0 : index
    %0 = vector.load %arg1[%c0, %c0_0, %c0_1] : memref<2x8x256xf32, #tpu.memory_space<vmem>>, vector<2x8x256xf32>
    %cst = arith.constant dense<0.000000e+00> : vector<8xf32>
    %1 = vector.multi_reduction <add>, %0, %cst [0, 2] : vector<2x8x256xf32> to vector<8xf32>
    %2 = vector.shape_cast %1 : vector<8xf32> to vector<1x8x1xf32>
    %cst_2 = arith.constant 5.120000e+02 : f32
    %3 = vector.broadcast %cst_2 : f32 to vector<1x8x1xf32>
    %4 = arith.divf %2, %3 : vector<1x8x1xf32>
    %5 = vector.broadcast %4 : vector<1x8x1xf32> to vector<2x8x256xf32>
    %6 = arith.subf %0, %5 : vector<2x8x256xf32>
    %7 = arith.mulf %6, %6 : vector<2x8x256xf32>
    %cst_3 = arith.constant dense<0.000000e+00> : vector<8xf32>
    %8 = vector.multi_reduction <add>, %7, %cst_3 [0, 2] : vector<2x8x256xf32> to vector<8xf32>
    %9 = vector.shape_cast %8 : vector<8xf32> to vector<1x8x1xf32>
    %cst_4 = arith.constant 5.120000e+02 : f32
    %10 = vector.broadcast %cst_4 : f32 to vector<1x8x1xf32>
    %11 = arith.divf %9, %10 : vector<1x8x1xf32>
    %12 = vector.broadcast %4 : vector<1x8x1xf32> to vector<2x8x256xf32>
    %13 = arith.subf %0, %12 : vector<2x8x256xf32>
    %cst_5 = arith.constant 9.99999974E-6 : f32
    %14 = vector.broadcast %cst_5 : f32 to vector<1x8x1xf32>
    %15 = arith.addf %11, %14 : vector<1x8x1xf32>
    %16 = math.rsqrt %15 : vector<1x8x1xf32>
    %17 = vector.broadcast %16 : vector<1x8x1xf32> to vector<2x8x256xf32>
    %18 = arith.mulf %13, %17 : vector<2x8x256xf32>
    %cst_6 = arith.constant 0.000000e+00 : f32
    %19 = vector.broadcast %cst_6 : f32 to vector<2x8x256xf32>
    %20 = arith.maximumf %18, %19 : vector<2x8x256xf32>
    %c0_7 = arith.constant 0 : index
    %c0_8 = arith.constant 0 : index
    %c0_9 = arith.constant 0 : index
    %21 = vector.load %arg2[%c0_7, %c0_8, %c0_9] : memref<2x8x256xf32, #tpu.memory_space<vmem>>, vector<2x8x256xf32>
    tpu.vector_store %arg2[%c0_7, %c0_8, %c0_9], %20 {strides = array<i32>} : memref<2x8x256xf32, #tpu.memory_space<vmem>>, vector<2x8x256xf32>,
    return
  }
  func.func @transform_0(%arg0: i32) -> (i32, i32, i32) {
    %c0_i32 = arith.constant 0 : i32
    %c0_i32_0 = arith.constant 0 : i32
    %c0_i32_1 = arith.constant 0 : i32
    %c0_i32_2 = arith.constant 0 : i32
    return %c0_i32, %c0_i32_0, %c0_i32_1 : i32, i32, i32
  }
  func.func @transform_1(%arg0: i32) -> (i32, i32, i32) {
    %c0_i32 = arith.constant 0 : i32
    %c0_i32_0 = arith.constant 0 : i32
    %c0_i32_1 = arith.constant 0 : i32
    %c0_i32_2 = arith.constant 0 : i32
    return %c0_i32, %c0_i32_0, %c0_i32_1 : i32, i32, i32
  }
}

</mosaic_0001>

<llo_original>
// kernel: datrans_forward.3
$region0: #{datrans_forward.3}
  #allocation0 [shape = 'u32[]', space=smem, size = 0x4, offset = 0x4, fixed_abs, tag = 'smem constant byte address 0x4 - core index']
  #allocation1 [shape = 'u32[144,128]{1,0:T(1,128)}', space=vmem, size = 0x12000, scoped, tag = 'internal scratch']
  %s0 = inlined_call_operand.vmem [shape: f32[2,8,256], index: 0, kind: input, shape index: {}]
  %s1 = inlined_call_operand.vmem [shape: f32[2,8,256], index: 1, kind: output, shape index: {}]
  %s2 = sld [smem:[#allocation0]]
  $region14: #{datrans_forward.3} parent=0
    _
  %s4 = ssub.s32 1, %s2
  %s5 = scalar_select 0, %s4, %s2
  // Predicated region
  $region2: #{datrans_forward.3} parent=0 // pred_check
    _
  $region3: #{datrans_forward.3} parent=0 // pred_check_branch
    %7 = sbr.rel (0) target = $region5
  $region4: #{datrans_forward.3} parent=0 // pred_region
    _
  $region5: #{datrans_forward.3} parent=0 // pred_fallthru
    _
  %v8 = vld [vmem:[%s0] sm:$0xff]
  %v9 = vld [vmem:[%s0 + $0x8] sm:$0xff]
  %v10 = vld [vmem:[%s0 + $0x10] sm:$0xff]
  %v11 = vld [vmem:[%s0 + $0x18] sm:$0xff]
  %v12 = vadd.f32 %v8, %v9
  %v13 = vadd.f32 %v12, %v10
  %v14 = vadd.f32 %v13, %v11
  %15 = vadd.xlane.f32.xlu0 %v14
  %v16 = vpop.xlane.xlu0 %15
  %v17 = vrcp.pop 512.0
  %v18 = vmul.f32 %v16, %v17
  %v19 = vsub.f32 %v8, %v18
  %v20 = vsub.f32 %v9, %v18
  %v21 = vsub.f32 %v10, %v18
  %v22 = vsub.f32 %v11, %v18
  %v23 = vmul.f32 %v19, %v19
  %v24 = vmul.f32 %v20, %v20
  %v25 = vmul.f32 %v21, %v21
  %v26 = vmul.f32 %v22, %v22
  %v27 = vadd.f32 %v23, %v24
  %v28 = vadd.f32 %v27, %v25
  %v29 = vadd.f32 %v28, %v26
  %30 = vadd.xlane.f32.xlu0 %v29
  %v31 = vpop.xlane.xlu0 %30
  %v32 = vmul.f32 %v31, %v17
  %v33 = vadd.f32 %v32, 1e-05
  %v34 = vrsqrt.pop %v33
  %v35 = vmul.f32 %v19, %v34
  %v36 = vmul.f32 %v20, %v34
  %v37 = vmul.f32 %v21, %v34
  %v38 = vmul.f32 %v22, %v34
  %v39 = vmax.f32 %v35, 0.0
  %v40 = vmax.f32 %v36, 0.0
  %v41 = vmax.f32 %v37, 0.0
  %v42 = vmax.f32 %v38, 0.0
  %43 = vst [vmem:[%s1] sm:$0xff] %v39
  %44 = vst [vmem:[%s1 + $0x8] sm:$0xff] %v40
  %45 = vst [vmem:[%s1 + $0x10] sm:$0xff] %v41
  %46 = vst [vmem:[%s1 + $0x18] sm:$0xff] %v42
  // Predicated region
  $region6: #{datrans_forward.3} parent=0 // pred_check
    _
  $region7: #{datrans_forward.3} parent=0 // pred_check_branch
    %48 = sbr.rel (0) target = $region9
  $region8: #{datrans_forward.3} parent=0 // pred_region
    _
  $region9: #{datrans_forward.3} parent=0 // pred_fallthru
    _
  // Predicated region
  $region10: #{datrans_forward.3} parent=0 // pred_check
    _
  $region11: #{datrans_forward.3} parent=0 // pred_check_branch
    %50 = sbr.rel (0) target = $region13
  $region12: #{datrans_forward.3} parent=0 // pred_region
    _
  $region13: #{datrans_forward.3} parent=0 // pred_fallthru
    _

// kernel: datrans_forward.2
$region0: #{datrans_forward.2}
  #allocation0 [shape = 'u32[]', space=smem, size = 0x4, offset = 0x4, fixed_abs, tag = 'smem constant byte address 0x4 - core index']
  #allocation1 [shape = 'u32[144,128]{1,0:T(1,128)}', space=vmem, size = 0x12000, scoped, tag = 'internal scratch']
  %s0 = inlined_call_operand.vmem [shape: f32[2,4,256], index: 0, kind: input, shape index: {}]
  %s1 = inlined_call_operand.vmem [shape: f32[2,64,256], index: 1, kind: input, shape index: {}]
  %s2 = inlined_call_operand.vmem [shape: f32[16,4], index: 2, kind: input, shape index: {}]
  %s3 = inlined_call_operand.vmem [shape: f32[256,64], index: 3, kind: input, shape index: {}]
  %s4 = inlined_call_operand.vmem [shape: f32[2,8,8], index: 4, kind: input, shape index: {}]
  %s5 = inlined_call_operand.vmem [shape: f32[2,8,256], index: 5, kind: output, shape index: {}]
  %s6 = sld [smem:[#allocation0]]
  $region53: #{datrans_forward.2} parent=0
    _
  %s8 = ssub.s32 1, %s6
  %s9 = scalar_select 0, %s8, %s6
  loop: start=0, step=1, limit=4
  $region2: #{datrans_forward.2} parent=0 // loop_pre_header
    _
  $region3: #{datrans_forward.2} parent=0 // loop_header
    %s11 = sphi 0, %s15
    %p12 = scmp.ge.s32.totalorder %s11, 4
    %s21 = sphi 0, %s23
    %s24 = sphi 0, %s21
    %s25 = sphi 0, %s24
    %s41 = sphi 0, %s25
    %s47 = sphi 0, %s49
    %s50 = sphi 0, %s47
    %s51 = sphi 0, %s50
    %s67 = sphi 0, %s51
    %s71 = sphi 0, %s71
    %s73 = sphi 0, %s71
    %s74 = sphi 0, %s73
    %s88 = sphi 0, %s74
    %s92 = sphi 0, %s92
    %s94 = sphi 0, %s92
    %s95 = sphi 0, %s94
    %s109 = sphi 0, %s95
    %s113 = sphi 0, %s113
    %s115 = sphi 0, %s113
    %s116 = sphi 0, %s115
    %s130 = sphi 0, %s116
    %s136 = sphi 0, %s138
    %s139 = sphi 0, %s136
    %s140 = sphi 0, %s139
    %s156 = sphi 0, %s140
  $region4: #{datrans_forward.2} parent=0 // loop_header_branch
    %14 = sbr.rel (%p12) target = $region8
  $region5: #{datrans_forward.2} parent=0 // loop_body
    %s16 = ssub.s32 %s11, 1
    %s17 = ssub.s32 %s11, 2
    %s18 = sadd.s32 %s11, 1
    %s19 = ssub.s32 %s11, %s18
    %p20 = scmp.eq.s32.totalorder %s19, 0
    %s22 = sadd.s32 %s21, 1
    %s23 = scalar_select %p20, %s21, %s22
    %p26 = pneg %p20
    %p27 = scmp.eq.s32.totalorder %s11, 1
    %p28 = por %p26, %p27
    %p29 = scmp.ne.s32.totalorder %s21, %s24
    %p30 = scmp.eq.s32.totalorder %s11, 0
    %p31 = por %p29, %p30
    %p32 = scmp.ne.s32.totalorder %s21, %s24
    %p33 = scmp.eq.s32.totalorder %s16, 1
    %p34 = por %p32, %p33
    %p35 = scmp.ne.s32.totalorder %s24, %s25
    %p36 = scmp.eq.s32.totalorder %s16, 0
    %p37 = por %p35, %p36
    %p38 = scmp.ne.s32.totalorder %s24, %s25
    %p39 = scmp.eq.s32.totalorder %s17, 1
    %p40 = por %p38, %p39
    %p42 = scmp.ne.s32.totalorder %s25, %s41
    %p43 = scmp.eq.s32.totalorder %s17, 0
    %p44 = por %p42, %p43
    %s45 = ssub.s32 %s11, %s18
    %p46 = scmp.eq.s32.totalorder %s45, 0
    %s48 = sadd.s32 %s47, 1
    %s49 = scalar_select %p46, %s47, %s48
    %p52 = pneg %p46
    %p53 = scmp.eq.s32.totalorder %s11, 1
    %p54 = por %p52, %p53
    %p55 = scmp.ne.s32.totalorder %s47, %s50
    %p56 = scmp.eq.s32.totalorder %s11, 0
    %p57 = por %p55, %p56
    %p58 = scmp.ne.s32.totalorder %s47, %s50
    %p59 = scmp.eq.s32.totalorder %s16, 1
    %p60 = por %p58, %p59
    %p61 = scmp.ne.s32.totalorder %s50, %s51
    %p62 = scmp.eq.s32.totalorder %s16, 0
    %p63 = por %p61, %p62
    %p64 = scmp.ne.s32.totalorder %s50, %s51
    %p65 = scmp.eq.s32.totalorder %s17, 1
    %p66 = por %p64, %p65
    %p68 = scmp.ne.s32.totalorder %s51, %s67
    %p69 = scmp.eq.s32.totalorder %s17, 0
    %p70 = por %p68, %p69
    %s72 = sadd.s32 %s71, 1
    %p75 = scmp.eq.s32.totalorder %s11, 1
    %p76 = scmp.ne.s32.totalorder %s71, %s73
    %p77 = scmp.eq.s32.totalorder %s11, 0
    %p78 = por %p76, %p77
    %p79 = scmp.ne.s32.totalorder %s71, %s73
    %p80 = scmp.eq.s32.totalorder %s16, 1
    %p81 = por %p79, %p80
    %p82 = scmp.ne.s32.totalorder %s73, %s74
    %p83 = scmp.eq.s32.totalorder %s16, 0
    %p84 = por %p82, %p83
    %p85 = scmp.ne.s32.totalorder %s73, %s74
    %p86 = scmp.eq.s32.totalorder %s17, 1
    %p87 = por %p85, %p86
    %p89 = scmp.ne.s32.totalorder %s74, %s88
    %p90 = scmp.eq.s32.totalorder %s17, 0
    %p91 = por %p89, %p90
    %s93 = sadd.s32 %s92, 1
    %p96 = scmp.eq.s32.totalorder %s11, 1
    %p97 = scmp.ne.s32.totalorder %s92, %s94
    %p98 = scmp.eq.s32.totalorder %s11, 0
    %p99 = por %p97, %p98
    %p100 = scmp.ne.s32.totalorder %s92, %s94
    %p101 = scmp.eq.s32.totalorder %s16, 1
    %p102 = por %p100, %p101
    %p103 = scmp.ne.s32.totalorder %s94, %s95
    %p104 = scmp.eq.s32.totalorder %s16, 0
    %p105 = por %p103, %p104
    %p106 = scmp.ne.s32.totalorder %s94, %s95
    %p107 = scmp.eq.s32.totalorder %s17, 1
    %p108 = por %p106, %p107
    %p110 = scmp.ne.s32.totalorder %s95, %s109
    %p111 = scmp.eq.s32.totalorder %s17, 0
    %p112 = por %p110, %p111
    %s114 = sadd.s32 %s113, 1
    %p117 = scmp.eq.s32.totalorder %s11, 1
    %p118 = scmp.ne.s32.totalorder %s113, %s115
    %p119 = scmp.eq.s32.totalorder %s11, 0
    %p120 = por %p118, %p119
    %p121 = scmp.ne.s32.totalorder %s113, %s115
    %p122 = scmp.eq.s32.totalorder %s16, 1
    %p123 = por %p121, %p122
    %p124 = scmp.ne.s32.totalorder %s115, %s116
    %p125 = scmp.eq.s32.totalorder %s16, 0
    %p126 = por %p124, %p125
    %p127 = scmp.ne.s32.totalorder %s115, %s116
    %p128 = scmp.eq.s32.totalorder %s17, 1
    %p129 = por %p127, %p128
    %p131 = scmp.ne.s32.totalorder %s116, %s130
    %p132 = scmp.eq.s32.totalorder %s17, 0
    %p133 = por %p131, %p132
    %s134 = ssub.s32 %s11, %s18
    %p135 = scmp.eq.s32.totalorder %s134, 0
    %s137 = sadd.s32 %s136, 1
    %s138 = scalar_select %p135, %s136, %s137
    %p141 = pneg %p135
    %p142 = scmp.eq.s32.totalorder %s11, 1
    %p143 = por %p141, %p142
    %p144 = scmp.ne.s32.totalorder %s136, %s139
    %p145 = scmp.eq.s32.totalorder %s11, 0
    %p146 = por %p144, %p145
    %p147 = scmp.ne.s32.totalorder %s136, %s139
    %p148 = scmp.eq.s32.totalorder %s16, 1
    %p149 = por %p147, %p148
    %p150 = scmp.ne.s32.totalorder %s139, %s140
    %p151 = scmp.eq.s32.totalorder %s16, 0
    %p152 = por %p150, %p151
    %p153 = scmp.ne.s32.totalorder %s139, %s140
    %p154 = scmp.eq.s32.totalorder %s17, 1
    %p155 = por %p153, %p154
    %p157 = scmp.ne.s32.totalorder %s140, %s156
    %p158 = scmp.eq.s32.totalorder %s17, 0
    %p159 = por %p157, %p158
    %p160 = scmp.le.s32.totalorder 1, %s11
    %p161 = scmp.lt.s32.totalorder %s11, 3
    %p162 = pnand %p160, %p161
    %p163 = pneg %p162
    // Predicated region
    $region9: #{datrans_forward.2} parent=5 // pred_check
      _
    $region10: #{datrans_forward.2} parent=5 // pred_check_branch
      %165 = sbr.rel (%p162) target = $region12
    $region11: #{datrans_forward.2} parent=5 // pred_region
      %s166 = ssub.s32 %s11, 1
      // Predicated region
      $region13: #{datrans_forward.2} parent=11 // pred_check
        %p167 = pneg %p84
      $region14: #{datrans_forward.2} parent=11 // pred_check_branch
        %169 = sbr.rel (%p167) target = $region16
      $region15: #{datrans_forward.2} parent=11 // pred_region
        _
      $region16: #{datrans_forward.2} parent=11 // pred_fallthru
        _
      // Predicated region
      $region17: #{datrans_forward.2} parent=11 // pred_check
        %p170 = pneg %p105
      $region18: #{datrans_forward.2} parent=11 // pred_check_branch
        %172 = sbr.rel (%p170) target = $region20
      $region19: #{datrans_forward.2} parent=11 // pred_region
        _
      $region20: #{datrans_forward.2} parent=11 // pred_fallthru
        _
      // Predicated region
      $region21: #{datrans_forward.2} parent=11 // pred_check
        %p173 = pneg %p126
      $region22: #{datrans_forward.2} parent=11 // pred_check_branch
        %175 = sbr.rel (%p173) target = $region24
      $region23: #{datrans_forward.2} parent=11 // pred_region
        _
      $region24: #{datrans_forward.2} parent=11 // pred_fallthru
        _
    $region12: #{datrans_forward.2} parent=5 // pred_fallthru
      _
    %p176 = scmp.lt.s32.totalorder %s11, 2
    // Predicated region
    $region25: #{datrans_forward.2} parent=5 // pred_check
      %p177 = pneg %p176
    $region26: #{datrans_forward.2} parent=5 // pred_check_branch
      %179 = sbr.rel (%p177) target = $region28
    $region27: #{datrans_forward.2} parent=5 // pred_region
      // Predicated region
      $region29: #{datrans_forward.2} parent=27 // pred_check
        %p180 = pneg %p31
      $region30: #{datrans_forward.2} parent=27 // pred_check_branch
        %182 = sbr.rel (%p180) target = $region32
      $region31: #{datrans_forward.2} parent=27 // pred_region
        %p183 = scmp.lt.s32.totalorder %s11, 1
        %s184 = scalar_select %p183, %s11, 1
        %s185 = smul.addr %s184, 2
        %s186 = smul.addr %s185, 4
        %s187 = scalar_lea.vmem %s0, %s186
      $region32: #{datrans_forward.2} parent=27 // pred_fallthru
        _
      // Predicated region
      $region33: #{datrans_forward.2} parent=27 // pred_check
        %p188 = pneg %p57
      $region34: #{datrans_forward.2} parent=27 // pred_check_branch
        %190 = sbr.rel (%p188) target = $region36
      $region35: #{datrans_forward.2} parent=27 // pred_region
        %p191 = scmp.lt.s32.totalorder %s11, 1
        %s192 = scalar_select %p191, %s11, 1
        %s193 = smul.addr %s192, 16
        %s194 = smul.addr %s193, 8
        %s195 = scalar_lea.vmem %s1, %s194
      $region36: #{datrans_forward.2} parent=27 // pred_fallthru
        _
    $region28: #{datrans_forward.2} parent=5 // pred_fallthru
      _
    %p196 = scmp.le.s32.totalorder 1, %s11
    %p197 = scmp.lt.s32.totalorder %s11, 3
    %p198 = pnand %p196, %p197
    %p199 = pneg %p198
    // Predicated region
    $region37: #{datrans_forward.2} parent=5 // pred_check
      _
    $region38: #{datrans_forward.2} parent=5 // pred_check_branch
      %201 = sbr.rel (%p198) target = $region40
    $region39: #{datrans_forward.2} parent=5 // pred_region
      %s202 = ssub.s32 %s11, 1
      %p203 = scmp.lt.s32.totalorder %s16, 1
      %s204 = scalar_select %p203, %s16, 1
      %s205 = smul.addr %s204, 2
      %s206 = smul.addr %s205, 4
      %s207 = scalar_lea.vmem %s0, %s206
      %p208 = pneg %p37
      %p209 = pneg %p34
      %p210 = scmp.lt.s32.totalorder %s16, 1
      %s211 = scalar_select %p210, %s16, 1
      %s212 = smul.addr %s211, 16
      %s213 = smul.addr %s212, 8
      %s214 = scalar_lea.vmem %s1, %s213
      %p215 = pneg %p63
      %p216 = pneg %p60
      %p217 = pneg %p84
      %p218 = pneg %p81
      %p219 = pneg %p105
      %p220 = pneg %p102
      %p221 = pneg %p126
      %p222 = pneg %p123
      %p223 = pneg %p152
      %p224 = pneg %p149
      %p225 = scmp.lt.s32.totalorder %s16, 1
      %s226 = scalar_select %p225, %s16, 1
      %s227 = smul.addr %s226, 2
      %s228 = smul.addr %s227, 8
      %s229 = scalar_lea.vmem %s5, %s228
      %p230 = scmp.lt.s32.totalorder %s16, 1
      %s231 = scalar_select %p230, %s16, 1
      %s232 = smul.addr %s231, 2
      %s233 = smul.addr %s232, 4
      %s234 = scalar_lea.vmem %s0, %s233
      %p235 = scmp.lt.s32.totalorder %s16, 1
      %s236 = scalar_select %p235, %s16, 1
      %s237 = smul.addr %s236, 16
      %s238 = smul.addr %s237, 8
      %s239 = scalar_lea.vmem %s1, %s238
      %p240 = scmp.lt.s32.totalorder %s16, 1
      %s241 = scalar_select %p240, %s16, 1
      %s242 = smul.addr %s241, 2
      %s243 = smul.addr %s242, 8
      %s244 = scalar_lea.vmem %s5, %s243
      %v245 = vld [vmem:[%s234] sm:$0xff]
      %v246 = vld [vmem:[%s239] sm:$0xff]
      %v247 = vld [vmem:[%s239 + $0x8] sm:$0xff]
      %v248 = vld [vmem:[%s239 + $0x10] sm:$0xff]
      %v249 = vld [vmem:[%s239 + $0x18] sm:$0xff]
      %v250 = vld [vmem:[%s239 + $0x20] sm:$0xff]
      %v251 = vld [vmem:[%s239 + $0x28] sm:$0xff]
      %v252 = vld [vmem:[%s239 + $0x30] sm:$0xff]
      %v253 = vld [vmem:[%s239 + $0x38] sm:$0xff]
      %v254 = vld [vmem:[%s239 + $0x40] sm:$0xff]
      %v255 = vld [vmem:[%s239 + $0x48] sm:$0xff]
      %v256 = vld [vmem:[%s239 + $0x50] sm:$0xff]
      %v257 = vld [vmem:[%s239 + $0x58] sm:$0xff]
      %v258 = vld [vmem:[%s239 + $0x60] sm:$0xff]
      %v259 = vld [vmem:[%s239 + $0x68] sm:$0xff]
      %v260 = vld [vmem:[%s239 + $0x70] sm:$0xff]
      %v261 = vld [vmem:[%s239 + $0x78] sm:$0xff]
      %v262 = vld [vmem:[%s2] sm:$0xff]
      %v263 = vld [vmem:[%s2 + $0x8] sm:$0xff]
      %v265 = vcombine.high %v245, %v245
      %vm266 = vcmask 31744
      %v268 = vsel %vm266, %v262, 0
      %v271 = vsel %vm266, %v263, 0
      %vm273 = vcmask 1043456
      %v274 = vsel %vm273, %v245, 0
      %v276 = vsel %vm273, %v265, 0
      %278 = vmatprep.subr.mxu0 %v276
      %279 = vmatpush1.msra.mxu0 %v274
      %280 = vmatprep.subr.mxu0 0.0
      %281 = vmatpush1.msra.mxu0 0.0
      %282 = vmatprep.subr.mxu0 0.0
      %283 = vmatpush1.msra.mxu0 0.0
      %284 = vmatprep.subr.mxu0 0.0
      %285 = vmatpush1.msra.mxu0 0.0
      %286 = vmatprep.subr.mxu0 0.0
      %287 = vmatpush1.msra.mxu0 0.0
      %288 = vmatprep.subr.mxu0 0.0
      %289 = vmatpush1.msra.mxu0 0.0
      %290 = vmatprep.subr.mxu0 0.0
      %291 = vmatpush1.msra.mxu0 0.0
      %292 = vmatprep.subr.mxu0 0.0
      %293 = vmatpush1.msra.mxu0 0.0
      %294 = vmatprep.subr.mxu0 0.0
      %295 = vmatpush1.msra.mxu0 0.0
      %296 = vmatprep.subr.mxu0 0.0
      %297 = vmatpush1.msra.mxu0 0.0
      %298 = vmatprep.subr.mxu0 0.0
      %299 = vmatpush1.msra.mxu0 0.0
      %300 = vmatprep.subr.mxu0 0.0
      %301 = vmatpush1.msra.mxu0 0.0
      %302 = vmatprep.subr.mxu0 0.0
      %303 = vmatpush1.msra.mxu0 0.0
      %304 = vmatprep.subr.mxu0 0.0
      %305 = vmatpush1.msra.mxu0 0.0
      %306 = vmatprep.subr.mxu0 0.0
      %307 = vmatpush1.msra.mxu0 0.0
      %308 = vmatprep.subr.mxu0 0.0
      %309 = vmatpush1.msra.mxu0 0.0
      %310 = vmatprep.subr.mxu0 0.0
      %311 = vmatpush1.msra.mxu0 0.0
      %312 = vmatprep.subr.mxu0 0.0
      %313 = vmatpush1.msra.mxu0 0.0
      %314 = vmatprep.subr.mxu0 0.0
      %315 = vmatpush1.msra.mxu0 0.0
      %316 = vmatprep.subr.mxu0 0.0
      %317 = vmatpush1.msra.mxu0 0.0
      %318 = vmatprep.subr.mxu0 0.0
      %319 = vmatpush1.msra.mxu0 0.0
      %320 = vmatprep.subr.mxu0 0.0
      %321 = vmatpush1.msra.mxu0 0.0
      %322 = vmatprep.subr.mxu0 0.0
      %323 = vmatpush1.msra.mxu0 0.0
      %324 = vmatprep.subr.mxu0 0.0
      %325 = vmatpush1.msra.mxu0 0.0
      %326 = vmatprep.subr.mxu0 0.0
      %327 = vmatpush1.msra.mxu0 0.0
      %328 = vmatprep.subr.mxu0 0.0
      %329 = vmatpush1.msra.mxu0 0.0
      %330 = vmatprep.subr.mxu0 0.0
      %331 = vmatpush1.msra.mxu0 0.0
      %332 = vmatprep.subr.mxu0 0.0
      %333 = vmatpush1.msra.mxu0 0.0
      %334 = vmatprep.subr.mxu0 0.0
      %335 = vmatpush1.msra.mxu0 0.0
      %336 = vmatprep.subr.mxu0 0.0
      %337 = vmatpush1.msra.mxu0 0.0
      %338 = vmatprep.subr.mxu0 0.0
      %339 = vmatpush1.msra.mxu0 0.0
      %340 = vmatprep.subr.mxu0 0.0
      %341 = vmatpush1.msra.mxu0 0.0
      %342 = vmatprep.mubr.f32.mxu0 0.0
      %343 = vmatmul.mubr.f32.gmra.mrb[0].mxu0 %v268
      %v344 = vpop.f32.mrb[0].mxu0
      %v345 = vadd.f32 0.0, %v344
      %v346 = vpop.f32.mrb[0].mxu0
      %v347 = vadd.f32 0.0, %v346
      %348 = vmatprep.mubr.f32.mxu0 0.0
      %349 = vmatmul.mubr.f32.gmra.mrb[0].mxu0 %v271
      %v350 = vpop.f32.mrb[0].mxu0
      %v351 = vadd.f32 0.0, %v350
      %v352 = vpop.f32.mrb[0].mxu0
      %v353 = vadd.f32 0.0, %v352
      %354 = vdwg.mxu0
      %v355 = vld [vmem:[%s3] sm:$0xff]
      %v356 = vld [vmem:[%s3 + $0x8] sm:$0xff]
      %v357 = vld [vmem:[%s3 + $0x10] sm:$0xff]
      %v358 = vld [vmem:[%s3 + $0x18] sm:$0xff]
      %v359 = vld [vmem:[%s3 + $0x20] sm:$0xff]
      %v360 = vld [vmem:[%s3 + $0x28] sm:$0xff]
      %v361 = vld [vmem:[%s3 + $0x30] sm:$0xff]
      %v362 = vld [vmem:[%s3 + $0x38] sm:$0xff]
      %v363 = vld [vmem:[%s3 + $0x40] sm:$0xff]
      %v364 = vld [vmem:[%s3 + $0x48] sm:$0xff]
      %v365 = vld [vmem:[%s3 + $0x50] sm:$0xff]
      %v366 = vld [vmem:[%s3 + $0x58] sm:$0xff]
      %v367 = vld [vmem:[%s3 + $0x60] sm:$0xff]
      %v368 = vld [vmem:[%s3 + $0x68] sm:$0xff]
      %v369 = vld [vmem:[%s3 + $0x70] sm:$0xff]
      %v370 = vld [vmem:[%s3 + $0x78] sm:$0xff]
      %v371 = vld [vmem:[%s3 + $0x80] sm:$0xff]
      %v372 = vld [vmem:[%s3 + $0x88] sm:$0xff]
      %v373 = vld [vmem:[%s3 + $0x90] sm:$0xff]
      %v374 = vld [vmem:[%s3 + $0x98] sm:$0xff]
      %v375 = vld [vmem:[%s3 + $0xa0] sm:$0xff]
      %v376 = vld [vmem:[%s3 + $0xa8] sm:$0xff]
      %v377 = vld [vmem:[%s3 + $0xb0] sm:$0xff]
      %v378 = vld [vmem:[%s3 + $0xb8] sm:$0xff]
      %v379 = vld [vmem:[%s3 + $0xc0] sm:$0xff]
      %v380 = vld [vmem:[%s3 + $0xc8] sm:$0xff]
      %v381 = vld [vmem:[%s3 + $0xd0] sm:$0xff]
      %v382 = vld [vmem:[%s3 + $0xd8] sm:$0xff]
      %v383 = vld [vmem:[%s3 + $0xe0] sm:$0xff]
      %v384 = vld [vmem:[%s3 + $0xe8] sm:$0xff]
      %v385 = vld [vmem:[%s3 + $0xf0] sm:$0xff]
      %v386 = vld [vmem:[%s3 + $0xf8] sm:$0xff]
      %vm387 = vcmask 523264
      %v389 = vsel %vm387, %v355, 0
      %v392 = vsel %vm387, %v356, 0
      %v395 = vsel %vm387, %v357, 0
      %v398 = vsel %vm387, %v358, 0
      %v401 = vsel %vm387, %v359, 0
      %v404 = vsel %vm387, %v360, 0
      %v407 = vsel %vm387, %v361, 0
      %v410 = vsel %vm387, %v362, 0
      %v413 = vsel %vm387, %v363, 0
      %v416 = vsel %vm387, %v364, 0
      %v419 = vsel %vm387, %v365, 0
      %v422 = vsel %vm387, %v366, 0
      %v425 = vsel %vm387, %v367, 0
      %v428 = vsel %vm387, %v368, 0
      %v431 = vsel %vm387, %v369, 0
      %v434 = vsel %vm387, %v370, 0
      %v437 = vsel %vm387, %v371, 0
      %v440 = vsel %vm387, %v372, 0
      %v443 = vsel %vm387, %v373, 0
      %v446 = vsel %vm387, %v374, 0
      %v449 = vsel %vm387, %v375, 0
      %v452 = vsel %vm387, %v376, 0
      %v455 = vsel %vm387, %v377, 0
      %v458 = vsel %vm387, %v378, 0
      %v461 = vsel %vm387, %v379, 0
      %v464 = vsel %vm387, %v380, 0
      %v467 = vsel %vm387, %v381, 0
      %v470 = vsel %vm387, %v382, 0
      %v473 = vsel %vm387, %v383, 0
      %v476 = vsel %vm387, %v384, 0
      %v479 = vsel %vm387, %v385, 0
      %v482 = vsel %vm387, %v386, 0
      %484 = vmatprep.subr.mxu0 %v247
      %485 = vmatpush1.msra.mxu0 %v246
      %486 = vmatprep.subr.mxu0 %v249
      %487 = vmatpush1.msra.mxu0 %v248
      %488 = vmatprep.subr.mxu0 %v251
      %489 = vmatpush1.msra.mxu0 %v250
      %490 = vmatprep.subr.mxu0 %v253
      %491 = vmatpush1.msra.mxu0 %v252
      %492 = vmatprep.subr.mxu0 %v255
      %493 = vmatpush1.msra.mxu0 %v254
      %494 = vmatprep.subr.mxu0 %v257
      %495 = vmatpush1.msra.mxu0 %v256
      %496 = vmatprep.subr.mxu0 %v259
      %497 = vmatpush1.msra.mxu0 %v258
      %498 = vmatprep.subr.mxu0 %v261
      %499 = vmatpush1.msra.mxu0 %v260
      %500 = vmatprep.subr.mxu0 0.0
      %501 = vmatpush1.msra.mxu0 0.0
      %502 = vmatprep.subr.mxu0 0.0
      %503 = vmatpush1.msra.mxu0 0.0
      %504 = vmatprep.subr.mxu0 0.0
      %505 = vmatpush1.msra.mxu0 0.0
      %506 = vmatprep.subr.mxu0 0.0
      %507 = vmatpush1.msra.mxu0 0.0
      %508 = vmatprep.subr.mxu0 0.0
      %509 = vmatpush1.msra.mxu0 0.0
      %510 = vmatprep.subr.mxu0 0.0
      %511 = vmatpush1.msra.mxu0 0.0
      %512 = vmatprep.subr.mxu0 0.0
      %513 = vmatpush1.msra.mxu0 0.0
      %514 = vmatprep.subr.mxu0 0.0
      %515 = vmatpush1.msra.mxu0 0.0
      %516 = vmatprep.subr.mxu0 0.0
      %517 = vmatpush1.msra.mxu0 0.0
      %518 = vmatprep.subr.mxu0 0.0
      %519 = vmatpush1.msra.mxu0 0.0
      %520 = vmatprep.subr.mxu0 0.0
      %521 = vmatpush1.msra.mxu0 0.0
      %522 = vmatprep.subr.mxu0 0.0
      %523 = vmatpush1.msra.mxu0 0.0
      %524 = vmatprep.subr.mxu0 0.0
      %525 = vmatpush1.msra.mxu0 0.0
      %526 = vmatprep.subr.mxu0 0.0
      %527 = vmatpush1.msra.mxu0 0.0
      %528 = vmatprep.subr.mxu0 0.0
      %529 = vmatpush1.msra.mxu0 0.0
      %530 = vmatprep.subr.mxu0 0.0
      %531 = vmatpush1.msra.mxu0 0.0
      %532 = vmatprep.subr.mxu0 0.0
      %533 = vmatpush1.msra.mxu0 0.0
      %534 = vmatprep.subr.mxu0 0.0
      %535 = vmatpush1.msra.mxu0 0.0
      %536 = vmatprep.subr.mxu0 0.0
      %537 = vmatpush1.msra.mxu0 0.0
      %538 = vmatprep.subr.mxu0 0.0
      %539 = vmatpush1.msra.mxu0 0.0
      %540 = vmatprep.subr.mxu0 0.0
      %541 = vmatpush1.msra.mxu0 0.0
      %542 = vmatprep.subr.mxu0 0.0
      %543 = vmatpush1.msra.mxu0 0.0
      %544 = vmatprep.subr.mxu0 0.0
      %545 = vmatpush1.msra.mxu0 0.0
      %546 = vmatprep.subr.mxu0 0.0
      %547 = vmatpush1.msra.mxu0 0.0
      %548 = vmatprep.mubr.f32.mxu0 0.0
      %549 = vmatmul.mubr.f32.gmra.mrb[0].mxu0 %v389
      %v550 = vpop.f32.mrb[0].mxu0
      %v551 = vadd.f32 0.0, %v550
      %v552 = vpop.f32.mrb[0].mxu0
      %v553 = vadd.f32 0.0, %v552
      %554 = vmatprep.mubr.f32.mxu0 0.0
      %555 = vmatmul.mubr.f32.gmra.mrb[0].mxu0 %v392
      %v556 = vpop.f32.mrb[0].mxu0
      %v557 = vadd.f32 0.0, %v556
      %v558 = vpop.f32.mrb[0].mxu0
      %v559 = vadd.f32 0.0, %v558
      %560 = vmatprep.mubr.f32.mxu0 0.0
      %561 = vmatmul.mubr.f32.gmra.mrb[0].mxu0 %v395
      %v562 = vpop.f32.mrb[0].mxu0
      %v563 = vadd.f32 0.0, %v562
      %v564 = vpop.f32.mrb[0].mxu0
      %v565 = vadd.f32 0.0, %v564
      %566 = vmatprep.mubr.f32.mxu0 0.0
      %567 = vmatmul.mubr.f32.gmra.mrb[0].mxu0 %v398
      %v568 = vpop.f32.mrb[0].mxu0
      %v569 = vadd.f32 0.0, %v568
      %v570 = vpop.f32.mrb[0].mxu0
      %v571 = vadd.f32 0.0, %v570
      %572 = vmatprep.mubr.f32.mxu0 0.0
      %573 = vmatmul.mubr.f32.gmra.mrb[0].mxu0 %v401
      %v574 = vpop.f32.mrb[0].mxu0
      %v575 = vadd.f32 0.0, %v574
      %v576 = vpop.f32.mrb[0].mxu0
      %v577 = vadd.f32 0.0, %v576
      %578 = vmatprep.mubr.f32.mxu0 0.0
      %579 = vmatmul.mubr.f32.gmra.mrb[0].mxu0 %v404
      %v580 = vpop.f32.mrb[0].mxu0
      %v581 = vadd.f32 0.0, %v580
      %v582 = vpop.f32.mrb[0].mxu0
      %v583 = vadd.f32 0.0, %v582
      %584 = vmatprep.mubr.f32.mxu0 0.0
      %585 = vmatmul.mubr.f32.gmra.mrb[0].mxu0 %v407
      %v586 = vpop.f32.mrb[0].mxu0
      %v587 = vadd.f32 0.0, %v586
      %v588 = vpop.f32.mrb[0].mxu0
      %v589 = vadd.f32 0.0, %v588
      %590 = vmatprep.mubr.f32.mxu0 0.0
      %591 = vmatmul.mubr.f32.gmra.mrb[0].mxu0 %v410
      %v592 = vpop.f32.mrb[0].mxu0
      %v593 = vadd.f32 0.0, %v592
      %v594 = vpop.f32.mrb[0].mxu0
      %v595 = vadd.f32 0.0, %v594
      %596 = vmatprep.mubr.f32.mxu0 0.0
      %597 = vmatmul.mubr.f32.gmra.mrb[0].mxu0 %v413
      %v598 = vpop.f32.mrb[0].mxu0
      %v599 = vadd.f32 0.0, %v598
      %v600 = vpop.f32.mrb[0].mxu0
      %v601 = vadd.f32 0.0, %v600
      %602 = vmatprep.mubr.f32.mxu0 0.0
      %603 = vmatmul.mubr.f32.gmra.mrb[0].mxu0 %v416
      %v604 = vpop.f32.mrb[0].mxu0
      %v605 = vadd.f32 0.0, %v604
      %v606 = vpop.f32.mrb[0].mxu0
      %v607 = vadd.f32 0.0, %v606
      %608 = vmatprep.mubr.f32.mxu0 0.0
      %609 = vmatmul.mubr.f32.gmra.mrb[0].mxu0 %v419
      %v610 = vpop.f32.mrb[0].mxu0
      %v611 = vadd.f32 0.0, %v610
      %v612 = vpop.f32.mrb[0].mxu0
      %v613 = vadd.f32 0.0, %v612
      %614 = vmatprep.mubr.f32.mxu0 0.0
      %615 = vmatmul.mubr.f32.gmra.mrb[0].mxu0 %v422
      %v616 = vpop.f32.mrb[0].mxu0
      %v617 = vadd.f32 0.0, %v616
      %v618 = vpop.f32.mrb[0].mxu0
      %v619 = vadd.f32 0.0, %v618
      %620 = vmatprep.mubr.f32.mxu0 0.0
      %621 = vmatmul.mubr.f32.gmra.mrb[0].mxu0 %v425
      %v622 = vpop.f32.mrb[0].mxu0
      %v623 = vadd.f32 0.0, %v622
      %v624 = vpop.f32.mrb[0].mxu0
      %v625 = vadd.f32 0.0, %v624
      %626 = vmatprep.mubr.f32.mxu0 0.0
      %627 = vmatmul.mubr.f32.gmra.mrb[0].mxu0 %v428
      %v628 = vpop.f32.mrb[0].mxu0
      %v629 = vadd.f32 0.0, %v628
      %v630 = vpop.f32.mrb[0].mxu0
      %v631 = vadd.f32 0.0, %v630
      %632 = vmatprep.mubr.f32.mxu0 0.0
      %633 = vmatmul.mubr.f32.gmra.mrb[0].mxu0 %v431
      %v634 = vpop.f32.mrb[0].mxu0
      %v635 = vadd.f32 0.0, %v634
      %v636 = vpop.f32.mrb[0].mxu0
      %v637 = vadd.f32 0.0, %v636
      %638 = vmatprep.mubr.f32.mxu0 0.0
      %639 = vmatmul.mubr.f32.gmra.mrb[0].mxu0 %v434
      %v640 = vpop.f32.mrb[0].mxu0
      %v641 = vadd.f32 0.0, %v640
      %v642 = vpop.f32.mrb[0].mxu0
      %v643 = vadd.f32 0.0, %v642
      %644 = vmatprep.mubr.f32.mxu0 0.0
      %645 = vmatmul.mubr.f32.gmra.mrb[0].mxu0 %v437
      %v646 = vpop.f32.mrb[0].mxu0
      %v647 = vadd.f32 0.0, %v646
      %v648 = vpop.f32.mrb[0].mxu0
      %v649 = vadd.f32 0.0, %v648
      %650 = vmatprep.mubr.f32.mxu0 0.0
      %651 = vmatmul.mubr.f32.gmra.mrb[0].mxu0 %v440
      %v652 = vpop.f32.mrb[0].mxu0
      %v653 = vadd.f32 0.0, %v652
      %v654 = vpop.f32.mrb[0].mxu0
      %v655 = vadd.f32 0.0, %v654
      %656 = vmatprep.mubr.f32.mxu0 0.0
      %657 = vmatmul.mubr.f32.gmra.mrb[0].mxu0 %v443
      %v658 = vpop.f32.mrb[0].mxu0
      %v659 = vadd.f32 0.0, %v658
      %v660 = vpop.f32.mrb[0].mxu0
      %v661 = vadd.f32 0.0, %v660
      %662 = vmatprep.mubr.f32.mxu0 0.0
      %663 = vmatmul.mubr.f32.gmra.mrb[0].mxu0 %v446
      %v664 = vpop.f32.mrb[0].mxu0
      %v665 = vadd.f32 0.0, %v664
      %v666 = vpop.f32.mrb[0].mxu0
      %v667 = vadd.f32 0.0, %v666
      %668 = vmatprep.mubr.f32.mxu0 0.0
      %669 = vmatmul.mubr.f32.gmra.mrb[0].mxu0 %v449
      %v670 = vpop.f32.mrb[0].mxu0
      %v671 = vadd.f32 0.0, %v670
      %v672 = vpop.f32.mrb[0].mxu0
      %v673 = vadd.f32 0.0, %v672
      %674 = vmatprep.mubr.f32.mxu0 0.0
      %675 = vmatmul.mubr.f32.gmra.mrb[0].mxu0 %v452
      %v676 = vpop.f32.mrb[0].mxu0
      %v677 = vadd.f32 0.0, %v676
      %v678 = vpop.f32.mrb[0].mxu0
      %v679 = vadd.f32 0.0, %v678
      %680 = vmatprep.mubr.f32.mxu0 0.0
      %681 = vmatmul.mubr.f32.gmra.mrb[0].mxu0 %v455
      %v682 = vpop.f32.mrb[0].mxu0
      %v683 = vadd.f32 0.0, %v682
      %v684 = vpop.f32.mrb[0].mxu0
      %v685 = vadd.f32 0.0, %v684
      %686 = vmatprep.mubr.f32.mxu0 0.0
      %687 = vmatmul.mubr.f32.gmra.mrb[0].mxu0 %v458
      %v688 = vpop.f32.mrb[0].mxu0
      %v689 = vadd.f32 0.0, %v688
      %v690 = vpop.f32.mrb[0].mxu0
      %v691 = vadd.f32 0.0, %v690
      %692 = vmatprep.mubr.f32.mxu0 0.0
      %693 = vmatmul.mubr.f32.gmra.mrb[0].mxu0 %v461
      %v694 = vpop.f32.mrb[0].mxu0
      %v695 = vadd.f32 0.0, %v694
      %v696 = vpop.f32.mrb[0].mxu0
      %v697 = vadd.f32 0.0, %v696
      %698 = vmatprep.mubr.f32.mxu0 0.0
      %699 = vmatmul.mubr.f32.gmra.mrb[0].mxu0 %v464
      %v700 = vpop.f32.mrb[0].mxu0
      %v701 = vadd.f32 0.0, %v700
      %v702 = vpop.f32.mrb[0].mxu0
      %v703 = vadd.f32 0.0, %v702
      %704 = vmatprep.mubr.f32.mxu0 0.0
      %705 = vmatmul.mubr.f32.gmra.mrb[0].mxu0 %v467
      %v706 = vpop.f32.mrb[0].mxu0
      %v707 = vadd.f32 0.0, %v706
      %v708 = vpop.f32.mrb[0].mxu0
      %v709 = vadd.f32 0.0, %v708
      %710 = vmatprep.mubr.f32.mxu0 0.0
      %711 = vmatmul.mubr.f32.gmra.mrb[0].mxu0 %v470
      %v712 = vpop.f32.mrb[0].mxu0
      %v713 = vadd.f32 0.0, %v712
      %v714 = vpop.f32.mrb[0].mxu0
      %v715 = vadd.f32 0.0, %v714
      %716 = vmatprep.mubr.f32.mxu0 0.0
      %717 = vmatmul.mubr.f32.gmra.mrb[0].mxu0 %v473
      %v718 = vpop.f32.mrb[0].mxu0
      %v719 = vadd.f32 0.0, %v718
      %v720 = vpop.f32.mrb[0].mxu0
      %v721 = vadd.f32 0.0, %v720
      %722 = vmatprep.mubr.f32.mxu0 0.0
      %723 = vmatmul.mubr.f32.gmra.mrb[0].mxu0 %v476
      %v724 = vpop.f32.mrb[0].mxu0
      %v725 = vadd.f32 0.0, %v724
      %v726 = vpop.f32.mrb[0].mxu0
      %v727 = vadd.f32 0.0, %v726
      %728 = vmatprep.mubr.f32.mxu0 0.0
      %729 = vmatmul.mubr.f32.gmra.mrb[0].mxu0 %v479
      %v730 = vpop.f32.mrb[0].mxu0
      %v731 = vadd.f32 0.0, %v730
      %v732 = vpop.f32.mrb[0].mxu0
      %v733 = vadd.f32 0.0, %v732
      %734 = vmatprep.mubr.f32.mxu0 0.0
      %735 = vmatmul.mubr.f32.gmra.mrb[0].mxu0 %v482
      %v736 = vpop.f32.mrb[0].mxu0
      %v737 = vadd.f32 0.0, %v736
      %v738 = vpop.f32.mrb[0].mxu0
      %v739 = vadd.f32 0.0, %v738
      %740 = vdwg.mxu0
      %v741 = vmul.f32 %v345, %v345
      %v742 = vmul.f32 %v347, %v347
      %v743 = vadd.f32 %v741, %v742
      %744 = vadd.xlane.f32.xlu0 %v743
      %v745 = vpop.xlane.xlu0 %744
      %v746 = vmax.f32 %v745, 1e-24
      %v747 = vrsqrt.pop %v746
      %v748 = vmul.f32 %v345, %v747
      %v749 = vmul.f32 %v347, %v747
      %v750 = vmul.f32 %v551, %v551
      %v751 = vmul.f32 %v553, %v553
      %v752 = vmul.f32 %v557, %v557
      %v753 = vmul.f32 %v559, %v559
      %v754 = vmul.f32 %v563, %v563
      %v755 = vmul.f32 %v565, %v565
      %v756 = vmul.f32 %v569, %v569
      %v757 = vmul.f32 %v571, %v571
      %v758 = vmul.f32 %v575, %v575
      %v759 = vmul.f32 %v577, %v577
      %v760 = vmul.f32 %v581, %v581
      %v761 = vmul.f32 %v583, %v583
      %v762 = vmul.f32 %v587, %v587
      %v763 = vmul.f32 %v589, %v589
      %v764 = vmul.f32 %v593, %v593
      %v765 = vmul.f32 %v595, %v595
      %v766 = vadd.f32 %v750, %v751
      %767 = vadd.xlane.f32.xlu0 %v766
      %v768 = vpop.xlane.xlu0 %767
      %v769 = vadd.f32 %v752, %v753
      %770 = vadd.xlane.f32.xlu0 %v769
      %v771 = vpop.xlane.xlu0 %770
      %v772 = vadd.f32 %v754, %v755
      %773 = vadd.xlane.f32.xlu0 %v772
      %v774 = vpop.xlane.xlu0 %773
      %v775 = vadd.f32 %v756, %v757
      %776 = vadd.xlane.f32.xlu0 %v775
      %v777 = vpop.xlane.xlu0 %776
      %v778 = vadd.f32 %v758, %v759
      %779 = vadd.xlane.f32.xlu0 %v778
      %v780 = vpop.xlane.xlu0 %779
      %v781 = vadd.f32 %v760, %v761
      %782 = vadd.xlane.f32.xlu0 %v781
      %v783 = vpop.xlane.xlu0 %782
      %v784 = vadd.f32 %v762, %v763
      %785 = vadd.xlane.f32.xlu0 %v784
      %v786 = vpop.xlane.xlu0 %785
      %v787 = vadd.f32 %v764, %v765
      %788 = vadd.xlane.f32.xlu0 %v787
      %v789 = vpop.xlane.xlu0 %788
      %v790 = vmax.f32 %v768, 1e-24
      %v791 = vmax.f32 %v771, 1e-24
      %v792 = vmax.f32 %v774, 1e-24
      %v793 = vmax.f32 %v777, 1e-24
      %v794 = vmax.f32 %v780, 1e-24
      %v795 = vmax.f32 %v783, 1e-24
      %v796 = vmax.f32 %v786, 1e-24
      %v797 = vmax.f32 %v789, 1e-24
      %v798 = vrsqrt.pop %v790
      %v799 = vrsqrt.pop %v791
      %v800 = vrsqrt.pop %v792
      %v801 = vrsqrt.pop %v793
      %v802 = vrsqrt.pop %v794
      %v803 = vrsqrt.pop %v795
      %v804 = vrsqrt.pop %v796
      %v805 = vrsqrt.pop %v797
      %v806 = vmul.f32 %v551, %v798
      %v807 = vmul.f32 %v553, %v798
      %v808 = vmul.f32 %v557, %v799
      %v809 = vmul.f32 %v559, %v799
      %v810 = vmul.f32 %v563, %v800
      %v811 = vmul.f32 %v565, %v800
      %v812 = vmul.f32 %v569, %v801
      %v813 = vmul.f32 %v571, %v801
      %v814 = vmul.f32 %v575, %v802
      %v815 = vmul.f32 %v577, %v802
      %v816 = vmul.f32 %v581, %v803
      %v817 = vmul.f32 %v583, %v803
      %v818 = vmul.f32 %v587, %v804
      %v819 = vmul.f32 %v589, %v804
      %v820 = vmul.f32 %v593, %v805
      %v821 = vmul.f32 %v595, %v805
      %822 = vmatprep.subr.mxu0 %v807
      %823 = vmatpush1.xpose.msra.mxu0 %v806
      %824 = vmatprep.subr.mxu0 %v809
      %825 = vmatpush1.xpose.msra.mxu0 %v808
      %826 = vmatprep.subr.mxu0 %v811
      %827 = vmatpush1.xpose.msra.mxu0 %v810
      %828 = vmatprep.subr.mxu0 %v813
      %829 = vmatpush1.xpose.msra.mxu0 %v812
      %830 = vmatprep.subr.mxu0 %v815
      %831 = vmatpush1.xpose.msra.mxu0 %v814
      %832 = vmatprep.subr.mxu0 %v817
      %833 = vmatpush1.xpose.msra.mxu0 %v816
      %834 = vmatprep.subr.mxu0 %v819
      %835 = vmatpush1.xpose.msra.mxu0 %v818
      %836 = vmatprep.subr.mxu0 %v821
      %837 = vmatpush1.xpose.msra.mxu0 %v820
      %838 = vmatprep.subr.mxu0 0.0
      %839 = vmatpush1.xpose.msra.mxu0 0.0
      %840 = vmatprep.subr.mxu0 0.0
      %841 = vmatpush1.xpose.msra.mxu0 0.0
      %842 = vmatprep.subr.mxu0 0.0
      %843 = vmatpush1.xpose.msra.mxu0 0.0
      %844 = vmatprep.subr.mxu0 0.0
      %845 = vmatpush1.xpose.msra.mxu0 0.0
      %846 = vmatprep.subr.mxu0 0.0
      %847 = vmatpush1.xpose.msra.mxu0 0.0
      %848 = vmatprep.subr.mxu0 0.0
      %849 = vmatpush1.xpose.msra.mxu0 0.0
      %850 = vmatprep.subr.mxu0 0.0
      %851 = vmatpush1.xpose.msra.mxu0 0.0
      %852 = vmatprep.subr.mxu0 0.0
      %853 = vmatpush1.xpose.msra.mxu0 0.0
      %854 = vmatprep.subr.mxu0 0.0
      %855 = vmatpush1.xpose.msra.mxu0 0.0
      %856 = vmatprep.subr.mxu0 0.0
      %857 = vmatpush1.xpose.msra.mxu0 0.0
      %858 = vmatprep.subr.mxu0 0.0
      %859 = vmatpush1.xpose.msra.mxu0 0.0
      %860 = vmatprep.subr.mxu0 0.0
      %861 = vmatpush1.xpose.msra.mxu0 0.0
      %862 = vmatprep.subr.mxu0 0.0
      %863 = vmatpush1.xpose.msra.mxu0 0.0
      %864 = vmatprep.subr.mxu0 0.0
      %865 = vmatpush1.xpose.msra.mxu0 0.0
      %866 = vmatprep.subr.mxu0 0.0
      %867 = vmatpush1.xpose.msra.mxu0 0.0
      %868 = vmatprep.subr.mxu0 0.0
      %869 = vmatpush1.xpose.msra.mxu0 0.0
      %870 = vmatprep.subr.mxu0 0.0
      %871 = vmatpush1.xpose.msra.mxu0 0.0
      %872 = vmatprep.subr.mxu0 0.0
      %873 = vmatpush1.xpose.msra.mxu0 0.0
      %874 = vmatprep.subr.mxu0 0.0
      %875 = vmatpush1.xpose.msra.mxu0 0.0
      %876 = vmatprep.subr.mxu0 0.0
      %877 = vmatpush1.xpose.msra.mxu0 0.0
      %878 = vmatprep.subr.mxu0 0.0
      %879 = vmatpush1.xpose.msra.mxu0 0.0
      %880 = vmatprep.subr.mxu0 0.0
      %881 = vmatpush1.xpose.msra.mxu0 0.0
      %882 = vmatprep.subr.mxu0 0.0
      %883 = vmatpush1.xpose.msra.mxu0 0.0
      %884 = vmatprep.subr.mxu0 0.0
      %885 = vmatpush1.xpose.msra.mxu0 0.0
      %886 = vmatprep.mubr.f32.mxu0 %v749
      %887 = vmatmul.mubr.f32.gmra.mrb[0].mxu0 %v748
      %v888 = vpop.f32.mrb[0].mxu0
      %v889 = vadd.f32 0.0, %v888
      %v890 = vpop.f32.mrb[0].mxu0
      %891 = vdwg.mxu0
      %v892 = vmul.f32 %v889, 0.0625
      %v893 = vsel %vm387, %v892, 0.0
      %894 = vadd.xlane.f32.xlu0 %v893
      %v895 = vpop.xlane.xlu0 %894
      %v896 = vrot.slane %v895, 4
      %v897 = vadd.f32 %v895, %v896
      %v898 = vrot.slane %v897, 2
      %v899 = vadd.f32 %v897, %v898
      %v900 = vrot.slane %v899, 1
      %v901 = vadd.f32 %v899, %v900
      %s902 = vtos %v901
      %v903 = vrcp.pop 512.0
      %s904 = vtos %v903
      %s905 = smul.f32 %s902, %s904
      %v906 = vstv %s905
      %v907 = vsub.f32 %v892, %v906
      %v908 = vmul.f32 %v907, %v907
      %v909 = vsel %vm387, %v908, 0.0
      %910 = vadd.xlane.f32.xlu0 %v909
      %v911 = vpop.xlane.xlu0 %910
      %v912 = vrot.slane %v911, 4
      %v913 = vadd.f32 %v911, %v912
      %v914 = vrot.slane %v913, 2
      %v915 = vadd.f32 %v913, %v914
      %v916 = vrot.slane %v915, 1
      %v917 = vadd.f32 %v915, %v916
      %s918 = vtos %v917
      %v919 = vrcp.pop 512.0
      %s920 = vtos %v919
      %s921 = smul.f32 %s918, %s920
      %s922 = sadd.f32 %s921, 1e-05
      %v923 = vstv %s922
      %v924 = vrsqrt.pop %v923
      %s925 = vtos %v924
      %v926 = vstv %s925
      %v927 = vmul.f32 %v907, %v926
      %v928 = vsel %vm387, %v927, -inf
      %929 = vmax.xlane.f32.xlu0 %v928
      %v930 = vpop.xlane.xlu0 %929
      %v931 = vsub.f32 %v927, %v930
      %v932 = vmul.f32 %v931, 1.442695
      %v933 = vpow.pop %v932
      %v934 = vsel %vm387, %v933, 0.0
      %935 = vadd.xlane.f32.xlu0 %v934
      %v936 = vpop.xlane.xlu0 %935
      %v937 = vrcp.pop %v936
      %v938 = vmul.f32 %v933, %v937
      %v940 = vsel %vm387, %v938, 0
      %942 = vmatprep.subr.mxu0 %v649
      %943 = vmatpush1.msra.mxu0 %v647
      %944 = vmatprep.subr.mxu0 %v655
      %945 = vmatpush1.msra.mxu0 %v653
      %946 = vmatprep.subr.mxu0 %v661
      %947 = vmatpush1.msra.mxu0 %v659
      %948 = vmatprep.subr.mxu0 %v667
      %949 = vmatpush1.msra.mxu0 %v665
      %950 = vmatprep.subr.mxu0 %v673
      %951 = vmatpush1.msra.mxu0 %v671
      %952 = vmatprep.subr.mxu0 %v679
      %953 = vmatpush1.msra.mxu0 %v677
      %954 = vmatprep.subr.mxu0 %v685
      %955 = vmatpush1.msra.mxu0 %v683
      %956 = vmatprep.subr.mxu0 %v691
      %957 = vmatpush1.msra.mxu0 %v689
      %958 = vmatprep.subr.mxu0 0.0
      %959 = vmatpush1.msra.mxu0 0.0
      %960 = vmatprep.subr.mxu0 0.0
      %961 = vmatpush1.msra.mxu0 0.0
      %962 = vmatprep.subr.mxu0 0.0
      %963 = vmatpush1.msra.mxu0 0.0
      %964 = vmatprep.subr.mxu0 0.0
      %965 = vmatpush1.msra.mxu0 0.0
      %966 = vmatprep.subr.mxu0 0.0
      %967 = vmatpush1.msra.mxu0 0.0
      %968 = vmatprep.subr.mxu0 0.0
      %969 = vmatpush1.msra.mxu0 0.0
      %970 = vmatprep.subr.mxu0 0.0
      %971 = vmatpush1.msra.mxu0 0.0
      %972 = vmatprep.subr.mxu0 0.0
      %973 = vmatpush1.msra.mxu0 0.0
      %974 = vmatprep.subr.mxu0 0.0
      %975 = vmatpush1.msra.mxu0 0.0
      %976 = vmatprep.subr.mxu0 0.0
      %977 = vmatpush1.msra.mxu0 0.0
      %978 = vmatprep.subr.mxu0 0.0
      %979 = vmatpush1.msra.mxu0 0.0
      %980 = vmatprep.subr.mxu0 0.0
      %981 = vmatpush1.msra.mxu0 0.0
      %982 = vmatprep.subr.mxu0 0.0
      %983 = vmatpush1.msra.mxu0 0.0
      %984 = vmatprep.subr.mxu0 0.0
      %985 = vmatpush1.msra.mxu0 0.0
      %986 = vmatprep.subr.mxu0 0.0
      %987 = vmatpush1.msra.mxu0 0.0
      %988 = vmatprep.subr.mxu0 0.0
      %989 = vmatpush1.msra.mxu0 0.0
      %990 = vmatprep.subr.mxu0 0.0
      %991 = vmatpush1.msra.mxu0 0.0
      %992 = vmatprep.subr.mxu0 0.0
      %993 = vmatpush1.msra.mxu0 0.0
      %994 = vmatprep.subr.mxu0 0.0
      %995 = vmatpush1.msra.mxu0 0.0
      %996 = vmatprep.subr.mxu0 0.0
      %997 = vmatpush1.msra.mxu0 0.0
      %998 = vmatprep.subr.mxu0 0.0
      %999 = vmatpush1.msra.mxu0 0.0
      %1000 = vmatprep.subr.mxu0 0.0
      %1001 = vmatpush1.msra.mxu0 0.0
      %1002 = vmatprep.subr.mxu0 0.0
      %1003 = vmatpush1.msra.mxu0 0.0
      %1004 = vmatprep.subr.mxu0 0.0
      %1005 = vmatpush1.msra.mxu0 0.0
      %1006 = vmatprep.mubr.f32.mxu0 0.0
      %1007 = vmatmul.mubr.f32.gmra.mrb[0].mxu0 %v940
      %v1008 = vpop.f32.mrb[0].mxu0
      %v1009 = vadd.f32 0.0, %v1008
      %v1010 = vpop.f32.mrb[0].mxu0
      %v1011 = vadd.f32 0.0, %v1010
      %1012 = vdwg.mxu0
      %v1013 = vld [vmem:[%s4] sm:$0xff]
      %v1014 = vmul.f32 %v351, %v351
      %v1015 = vmul.f32 %v353, %v353
      %v1016 = vadd.f32 %v1014, %v1015
      %1017 = vadd.xlane.f32.xlu0 %v1016
      %v1018 = vpop.xlane.xlu0 %1017
      %v1019 = vmax.f32 %v1018, 1e-24
      %v1020 = vrsqrt.pop %v1019
      %v1021 = vmul.f32 %v351, %v1020
      %v1022 = vmul.f32 %v353, %v1020
      %v1023 = vmul.f32 %v599, %v599
      %v1024 = vmul.f32 %v601, %v601
      %v1025 = vmul.f32 %v605, %v605
      %v1026 = vmul.f32 %v607, %v607
      %v1027 = vmul.f32 %v611, %v611
      %v1028 = vmul.f32 %v613, %v613
      %v1029 = vmul.f32 %v617, %v617
      %v1030 = vmul.f32 %v619, %v619
      %v1031 = vmul.f32 %v623, %v623
      %v1032 = vmul.f32 %v625, %v625
      %v1033 = vmul.f32 %v629, %v629
      %v1034 = vmul.f32 %v631, %v631
      %v1035 = vmul.f32 %v635, %v635
      %v1036 = vmul.f32 %v637, %v637
      %v1037 = vmul.f32 %v641, %v641
      %v1038 = vmul.f32 %v643, %v643
      %v1039 = vadd.f32 %v1023, %v1024
      %1040 = vadd.xlane.f32.xlu0 %v1039
      %v1041 = vpop.xlane.xlu0 %1040
      %v1042 = vadd.f32 %v1025, %v1026
      %1043 = vadd.xlane.f32.xlu0 %v1042
      %v1044 = vpop.xlane.xlu0 %1043
      %v1045 = vadd.f32 %v1027, %v1028
      %1046 = vadd.xlane.f32.xlu0 %v1045
      %v1047 = vpop.xlane.xlu0 %1046
      %v1048 = vadd.f32 %v1029, %v1030
      %1049 = vadd.xlane.f32.xlu0 %v1048
      %v1050 = vpop.xlane.xlu0 %1049
      %v1051 = vadd.f32 %v1031, %v1032
      %1052 = vadd.xlane.f32.xlu0 %v1051
      %v1053 = vpop.xlane.xlu0 %1052
      %v1054 = vadd.f32 %v1033, %v1034
      %1055 = vadd.xlane.f32.xlu0 %v1054
      %v1056 = vpop.xlane.xlu0 %1055
      %v1057 = vadd.f32 %v1035, %v1036
      %1058 = vadd.xlane.f32.xlu0 %v1057
      %v1059 = vpop.xlane.xlu0 %1058
      %v1060 = vadd.f32 %v1037, %v1038
      %1061 = vadd.xlane.f32.xlu0 %v1060
      %v1062 = vpop.xlane.xlu0 %1061
      %v1063 = vmax.f32 %v1041, 1e-24
      %v1064 = vmax.f32 %v1044, 1e-24
      %v1065 = vmax.f32 %v1047, 1e-24
      %v1066 = vmax.f32 %v1050, 1e-24
      %v1067 = vmax.f32 %v1053, 1e-24
      %v1068 = vmax.f32 %v1056, 1e-24
      %v1069 = vmax.f32 %v1059, 1e-24
      %v1070 = vmax.f32 %v1062, 1e-24
      %v1071 = vrsqrt.pop %v1063
      %v1072 = vrsqrt.pop %v1064
      %v1073 = vrsqrt.pop %v1065
      %v1074 = vrsqrt.pop %v1066
      %v1075 = vrsqrt.pop %v1067
      %v1076 = vrsqrt.pop %v1068
      %v1077 = vrsqrt.pop %v1069
      %v1078 = vrsqrt.pop %v1070
      %v1079 = vmul.f32 %v599, %v1071
      %v1080 = vmul.f32 %v601, %v1071
      %v1081 = vmul.f32 %v605, %v1072
      %v1082 = vmul.f32 %v607, %v1072
      %v1083 = vmul.f32 %v611, %v1073
      %v1084 = vmul.f32 %v613, %v1073
      %v1085 = vmul.f32 %v617, %v1074
      %v1086 = vmul.f32 %v619, %v1074
      %v1087 = vmul.f32 %v623, %v1075
      %v1088 = vmul.f32 %v625, %v1075
      %v1089 = vmul.f32 %v629, %v1076
      %v1090 = vmul.f32 %v631, %v1076
      %v1091 = vmul.f32 %v635, %v1077
      %v1092 = vmul.f32 %v637, %v1077
      %v1093 = vmul.f32 %v641, %v1078
      %v1094 = vmul.f32 %v643, %v1078
      %1095 = vmatprep.subr.mxu0 %v1080
      %1096 = vmatpush1.xpose.msra.mxu0 %v1079
      %1097 = vmatprep.subr.mxu0 %v1082
      %1098 = vmatpush1.xpose.msra.mxu0 %v1081
      %1099 = vmatprep.subr.mxu0 %v1084
      %1100 = vmatpush1.xpose.msra.mxu0 %v1083
      %1101 = vmatprep.subr.mxu0 %v1086
      %1102 = vmatpush1.xpose.msra.mxu0 %v1085
      %1103 = vmatprep.subr.mxu0 %v1088
      %1104 = vmatpush1.xpose.msra.mxu0 %v1087
      %1105 = vmatprep.subr.mxu0 %v1090
      %1106 = vmatpush1.xpose.msra.mxu0 %v1089
      %1107 = vmatprep.subr.mxu0 %v1092
      %1108 = vmatpush1.xpose.msra.mxu0 %v1091
      %1109 = vmatprep.subr.mxu0 %v1094
      %1110 = vmatpush1.xpose.msra.mxu0 %v1093
      %1111 = vmatprep.subr.mxu0 0.0
      %1112 = vmatpush1.xpose.msra.mxu0 0.0
      %1113 = vmatprep.subr.mxu0 0.0
      %1114 = vmatpush1.xpose.msra.mxu0 0.0
      %1115 = vmatprep.subr.mxu0 0.0
      %1116 = vmatpush1.xpose.msra.mxu0 0.0
      %1117 = vmatprep.subr.mxu0 0.0
      %1118 = vmatpush1.xpose.msra.mxu0 0.0
      %1119 = vmatprep.subr.mxu0 0.0
      %1120 = vmatpush1.xpose.msra.mxu0 0.0
      %1121 = vmatprep.subr.mxu0 0.0
      %1122 = vmatpush1.xpose.msra.mxu0 0.0
      %1123 = vmatprep.subr.mxu0 0.0
      %1124 = vmatpush1.xpose.msra.mxu0 0.0
      %1125 = vmatprep.subr.mxu0 0.0
      %1126 = vmatpush1.xpose.msra.mxu0 0.0
      %1127 = vmatprep.subr.mxu0 0.0
      %1128 = vmatpush1.xpose.msra.mxu0 0.0
      %1129 = vmatprep.subr.mxu0 0.0
      %1130 = vmatpush1.xpose.msra.mxu0 0.0
      %1131 = vmatprep.subr.mxu0 0.0
      %1132 = vmatpush1.xpose.msra.mxu0 0.0
      %1133 = vmatprep.subr.mxu0 0.0
      %1134 = vmatpush1.xpose.msra.mxu0 0.0
      %1135 = vmatprep.subr.mxu0 0.0
      %1136 = vmatpush1.xpose.msra.mxu0 0.0
      %1137 = vmatprep.subr.mxu0 0.0
      %1138 = vmatpush1.xpose.msra.mxu0 0.0
      %1139 = vmatprep.subr.mxu0 0.0
      %1140 = vmatpush1.xpose.msra.mxu0 0.0
      %1141 = vmatprep.subr.mxu0 0.0
      %1142 = vmatpush1.xpose.msra.mxu0 0.0
      %1143 = vmatprep.subr.mxu0 0.0
      %1144 = vmatpush1.xpose.msra.mxu0 0.0
      %1145 = vmatprep.subr.mxu0 0.0
      %1146 = vmatpush1.xpose.msra.mxu0 0.0
      %1147 = vmatprep.subr.mxu0 0.0
      %1148 = vmatpush1.xpose.msra.mxu0 0.0
      %1149 = vmatprep.subr.mxu0 0.0
      %1150 = vmatpush1.xpose.msra.mxu0 0.0
      %1151 = vmatprep.subr.mxu0 0.0
      %1152 = vmatpush1.xpose.msra.mxu0 0.0
      %1153 = vmatprep.subr.mxu0 0.0
      %1154 = vmatpush1.xpose.msra.mxu0 0.0
      %1155 = vmatprep.subr.mxu0 0.0
      %1156 = vmatpush1.xpose.msra.mxu0 0.0
      %1157 = vmatprep.subr.mxu0 0.0
      %1158 = vmatpush1.xpose.msra.mxu0 0.0
      %1159 = vmatprep.mubr.f32.mxu0 %v1022
      %1160 = vmatmul.mubr.f32.gmra.mrb[0].mxu0 %v1021
      %v1161 = vpop.f32.mrb[0].mxu0
      %v1162 = vadd.f32 0.0, %v1161
      %v1163 = vpop.f32.mrb[0].mxu0
      %1164 = vdwg.mxu0
      %v1165 = vmul.f32 %v1162, 0.0625
      %v1166 = vsel %vm387, %v1165, 0.0
      %1167 = vadd.xlane.f32.xlu0 %v1166
      %v1168 = vpop.xlane.xlu0 %1167
      %v1169 = vrot.slane %v1168, 4
      %v1170 = vadd.f32 %v1168, %v1169
      %v1171 = vrot.slane %v1170, 2
      %v1172 = vadd.f32 %v1170, %v1171
      %v1173 = vrot.slane %v1172, 1
      %v1174 = vadd.f32 %v1172, %v1173
      %s1175 = vtos %v1174
      %v1176 = vrcp.pop 512.0
      %s1177 = vtos %v1176
      %s1178 = smul.f32 %s1175, %s1177
      %v1179 = vstv %s1178
      %v1180 = vsub.f32 %v1165, %v1179
      %v1181 = vmul.f32 %v1180, %v1180
      %v1182 = vsel %vm387, %v1181, 0.0
      %1183 = vadd.xlane.f32.xlu0 %v1182
      %v1184 = vpop.xlane.xlu0 %1183
      %v1185 = vrot.slane %v1184, 4
      %v1186 = vadd.f32 %v1184, %v1185
      %v1187 = vrot.slane %v1186, 2
      %v1188 = vadd.f32 %v1186, %v1187
      %v1189 = vrot.slane %v1188, 1
      %v1190 = vadd.f32 %v1188, %v1189
      %s1191 = vtos %v1190
      %v1192 = vrcp.pop 512.0
      %s1193 = vtos %v1192
      %s1194 = smul.f32 %s1191, %s1193
      %s1195 = sadd.f32 %s1194, 1e-05
      %v1196 = vstv %s1195
      %v1197 = vrsqrt.pop %v1196
      %s1198 = vtos %v1197
      %v1199 = vstv %s1198
      %v1200 = vmul.f32 %v1180, %v1199
      %v1201 = vsel %vm387, %v1200, -inf
      %1202 = vmax.xlane.f32.xlu0 %v1201
      %v1203 = vpop.xlane.xlu0 %1202
      %v1204 = vsub.f32 %v1200, %v1203
      %v1205 = vmul.f32 %v1204, 1.442695
      %v1206 = vpow.pop %v1205
      %v1207 = vsel %vm387, %v1206, 0.0
      %1208 = vadd.xlane.f32.xlu0 %v1207
      %v1209 = vpop.xlane.xlu0 %1208
      %v1210 = vrcp.pop %v1209
      %v1211 = vmul.f32 %v1206, %v1210
      %v1213 = vsel %vm387, %v1211, 0
      %1215 = vmatprep.subr.mxu0 %v697
      %1216 = vmatpush1.msra.mxu0 %v695
      %1217 = vmatprep.subr.mxu0 %v703
      %1218 = vmatpush1.msra.mxu0 %v701
      %1219 = vmatprep.subr.mxu0 %v709
      %1220 = vmatpush1.msra.mxu0 %v707
      %1221 = vmatprep.subr.mxu0 %v715
      %1222 = vmatpush1.msra.mxu0 %v713
      %1223 = vmatprep.subr.mxu0 %v721
      %1224 = vmatpush1.msra.mxu0 %v719
      %1225 = vmatprep.subr.mxu0 %v727
      %1226 = vmatpush1.msra.mxu0 %v725
      %1227 = vmatprep.subr.mxu0 %v733
      %1228 = vmatpush1.msra.mxu0 %v731
      %1229 = vmatprep.subr.mxu0 %v739
      %1230 = vmatpush1.msra.mxu0 %v737
      %1231 = vmatprep.subr.mxu0 0.0
      %1232 = vmatpush1.msra.mxu0 0.0
      %1233 = vmatprep.subr.mxu0 0.0
      %1234 = vmatpush1.msra.mxu0 0.0
      %1235 = vmatprep.subr.mxu0 0.0
      %1236 = vmatpush1.msra.mxu0 0.0
      %1237 = vmatprep.subr.mxu0 0.0
      %1238 = vmatpush1.msra.mxu0 0.0
      %1239 = vmatprep.subr.mxu0 0.0
      %1240 = vmatpush1.msra.mxu0 0.0
      %1241 = vmatprep.subr.mxu0 0.0
      %1242 = vmatpush1.msra.mxu0 0.0
      %1243 = vmatprep.subr.mxu0 0.0
      %1244 = vmatpush1.msra.mxu0 0.0
      %1245 = vmatprep.subr.mxu0 0.0
      %1246 = vmatpush1.msra.mxu0 0.0
      %1247 = vmatprep.subr.mxu0 0.0
      %1248 = vmatpush1.msra.mxu0 0.0
      %1249 = vmatprep.subr.mxu0 0.0
      %1250 = vmatpush1.msra.mxu0 0.0
      %1251 = vmatprep.subr.mxu0 0.0
      %1252 = vmatpush1.msra.mxu0 0.0
      %1253 = vmatprep.subr.mxu0 0.0
      %1254 = vmatpush1.msra.mxu0 0.0
      %1255 = vmatprep.subr.mxu0 0.0
      %1256 = vmatpush1.msra.mxu0 0.0
      %1257 = vmatprep.subr.mxu0 0.0
      %1258 = vmatpush1.msra.mxu0 0.0
      %1259 = vmatprep.subr.mxu0 0.0
      %1260 = vmatpush1.msra.mxu0 0.0
      %1261 = vmatprep.subr.mxu0 0.0
      %1262 = vmatpush1.msra.mxu0 0.0
      %1263 = vmatprep.subr.mxu0 0.0
      %1264 = vmatpush1.msra.mxu0 0.0
      %1265 = vmatprep.subr.mxu0 0.0
      %1266 = vmatpush1.msra.mxu0 0.0
      %1267 = vmatprep.subr.mxu0 0.0
      %1268 = vmatpush1.msra.mxu0 0.0
      %1269 = vmatprep.subr.mxu0 0.0
      %1270 = vmatpush1.msra.mxu0 0.0
      %1271 = vmatprep.subr.mxu0 0.0
      %1272 = vmatpush1.msra.mxu0 0.0
      %1273 = vmatprep.subr.mxu0 0.0
      %1274 = vmatpush1.msra.mxu0 0.0
      %1275 = vmatprep.subr.mxu0 0.0
      %1276 = vmatpush1.msra.mxu0 0.0
      %1277 = vmatprep.subr.mxu0 0.0
      %1278 = vmatpush1.msra.mxu0 0.0
      %1279 = vmatprep.mubr.f32.mxu0 0.0
      %1280 = vmatmul.mubr.f32.gmra.mrb[0].mxu0 %v1213
      %v1281 = vpop.f32.mrb[0].mxu0
      %v1282 = vadd.f32 0.0, %v1281
      %v1283 = vpop.f32.mrb[0].mxu0
      %v1284 = vadd.f32 0.0, %v1283
      %1285 = vdwg.mxu0
      %s1286 = scalar_lea.vmem %s4, 8
      %v1287 = vld [vmem:[%s1286] sm:$0xff]
      %vm1288 = vcmask 64512
      %v1290 = vsel %vm1288, %v1287, 0
      %1292 = vmatprep.subr.mxu0 %v1284
      %1293 = vmatpush1.msra.mxu0 %v1282
      %1294 = vmatprep.subr.mxu0 0.0
      %1295 = vmatpush1.msra.mxu0 0.0
      %1296 = vmatprep.subr.mxu0 0.0
      %1297 = vmatpush1.msra.mxu0 0.0
      %1298 = vmatprep.subr.mxu0 0.0
      %1299 = vmatpush1.msra.mxu0 0.0
      %1300 = vmatprep.subr.mxu0 0.0
      %1301 = vmatpush1.msra.mxu0 0.0
      %1302 = vmatprep.subr.mxu0 0.0
      %1303 = vmatpush1.msra.mxu0 0.0
      %1304 = vmatprep.subr.mxu0 0.0
      %1305 = vmatpush1.msra.mxu0 0.0
      %1306 = vmatprep.subr.mxu0 0.0
      %1307 = vmatpush1.msra.mxu0 0.0
      %1308 = vmatprep.subr.mxu0 0.0
      %1309 = vmatpush1.msra.mxu0 0.0
      %1310 = vmatprep.subr.mxu0 0.0
      %1311 = vmatpush1.msra.mxu0 0.0
      %1312 = vmatprep.subr.mxu0 0.0
      %1313 = vmatpush1.msra.mxu0 0.0
      %1314 = vmatprep.subr.mxu0 0.0
      %1315 = vmatpush1.msra.mxu0 0.0
      %1316 = vmatprep.subr.mxu0 0.0
      %1317 = vmatpush1.msra.mxu0 0.0
      %1318 = vmatprep.subr.mxu0 0.0
      %1319 = vmatpush1.msra.mxu0 0.0
      %1320 = vmatprep.subr.mxu0 0.0
      %1321 = vmatpush1.msra.mxu0 0.0
      %1322 = vmatprep.subr.mxu0 0.0
      %1323 = vmatpush1.msra.mxu0 0.0
      %1324 = vmatprep.subr.mxu0 0.0
      %1325 = vmatpush1.msra.mxu0 0.0
      %1326 = vmatprep.subr.mxu0 0.0
      %1327 = vmatpush1.msra.mxu0 0.0
      %1328 = vmatprep.subr.mxu0 0.0
      %1329 = vmatpush1.msra.mxu0 0.0
      %1330 = vmatprep.subr.mxu0 0.0
      %1331 = vmatpush1.msra.mxu0 0.0
      %1332 = vmatprep.subr.mxu0 0.0
      %1333 = vmatpush1.msra.mxu0 0.0
      %1334 = vmatprep.subr.mxu0 0.0
      %1335 = vmatpush1.msra.mxu0 0.0
      %1336 = vmatprep.subr.mxu0 0.0
      %1337 = vmatpush1.msra.mxu0 0.0
      %1338 = vmatprep.subr.mxu0 0.0
      %1339 = vmatpush1.msra.mxu0 0.0
      %1340 = vmatprep.subr.mxu0 0.0
      %1341 = vmatpush1.msra.mxu0 0.0
      %1342 = vmatprep.subr.mxu0 0.0
      %1343 = vmatpush1.msra.mxu0 0.0
      %1344 = vmatprep.subr.mxu0 0.0
      %1345 = vmatpush1.msra.mxu0 0.0
      %1346 = vmatprep.subr.mxu0 0.0
      %1347 = vmatpush1.msra.mxu0 0.0
      %1348 = vmatprep.subr.mxu0 0.0
      %1349 = vmatpush1.msra.mxu0 0.0
      %1350 = vmatprep.subr.mxu0 0.0
      %1351 = vmatpush1.msra.mxu0 0.0
      %1352 = vmatprep.subr.mxu0 0.0
      %1353 = vmatpush1.msra.mxu0 0.0
      %1354 = vmatprep.subr.mxu0 0.0
      %1355 = vmatpush1.msra.mxu0 0.0
      %1356 = vmatprep.mubr.f32.mxu0 0.0
      %1357 = vmatmul.mubr.f32.gmra.mrb[0].mxu0 %v1290
      %v1358 = vpop.f32.mrb[0].mxu0
      %v1359 = vadd.f32 0.0, %v1358
      %v1360 = vpop.f32.mrb[0].mxu0
      %v1361 = vadd.f32 0.0, %v1360
      %1362 = vdwg.mxu0
      %v1364 = vsel %vm1288, %v1013, 0
      %1366 = vmatprep.subr.mxu0 %v1011
      %1367 = vmatpush1.msra.mxu0 %v1009
      %1368 = vmatprep.subr.mxu0 0.0
      %1369 = vmatpush1.msra.mxu0 0.0
      %1370 = vmatprep.subr.mxu0 0.0
      %1371 = vmatpush1.msra.mxu0 0.0
      %1372 = vmatprep.subr.mxu0 0.0
      %1373 = vmatpush1.msra.mxu0 0.0
      %1374 = vmatprep.subr.mxu0 0.0
      %1375 = vmatpush1.msra.mxu0 0.0
      %1376 = vmatprep.subr.mxu0 0.0
      %1377 = vmatpush1.msra.mxu0 0.0
      %1378 = vmatprep.subr.mxu0 0.0
      %1379 = vmatpush1.msra.mxu0 0.0
      %1380 = vmatprep.subr.mxu0 0.0
      %1381 = vmatpush1.msra.mxu0 0.0
      %1382 = vmatprep.subr.mxu0 0.0
      %1383 = vmatpush1.msra.mxu0 0.0
      %1384 = vmatprep.subr.mxu0 0.0
      %1385 = vmatpush1.msra.mxu0 0.0
      %1386 = vmatprep.subr.mxu0 0.0
      %1387 = vmatpush1.msra.mxu0 0.0
      %1388 = vmatprep.subr.mxu0 0.0
      %1389 = vmatpush1.msra.mxu0 0.0
      %1390 = vmatprep.subr.mxu0 0.0
      %1391 = vmatpush1.msra.mxu0 0.0
      %1392 = vmatprep.subr.mxu0 0.0
      %1393 = vmatpush1.msra.mxu0 0.0
      %1394 = vmatprep.subr.mxu0 0.0
      %1395 = vmatpush1.msra.mxu0 0.0
      %1396 = vmatprep.subr.mxu0 0.0
      %1397 = vmatpush1.msra.mxu0 0.0
      %1398 = vmatprep.subr.mxu0 0.0
      %1399 = vmatpush1.msra.mxu0 0.0
      %1400 = vmatprep.subr.mxu0 0.0
      %1401 = vmatpush1.msra.mxu0 0.0
      %1402 = vmatprep.subr.mxu0 0.0
      %1403 = vmatpush1.msra.mxu0 0.0
      %1404 = vmatprep.subr.mxu0 0.0
      %1405 = vmatpush1.msra.mxu0 0.0
      %1406 = vmatprep.subr.mxu0 0.0
      %1407 = vmatpush1.msra.mxu0 0.0
      %1408 = vmatprep.subr.mxu0 0.0
      %1409 = vmatpush1.msra.mxu0 0.0
      %1410 = vmatprep.subr.mxu0 0.0
      %1411 = vmatpush1.msra.mxu0 0.0
      %1412 = vmatprep.subr.mxu0 0.0
      %1413 = vmatpush1.msra.mxu0 0.0
      %1414 = vmatprep.subr.mxu0 0.0
      %1415 = vmatpush1.msra.mxu0 0.0
      %1416 = vmatprep.subr.mxu0 0.0
      %1417 = vmatpush1.msra.mxu0 0.0
      %1418 = vmatprep.subr.mxu0 0.0
      %1419 = vmatpush1.msra.mxu0 0.0
      %1420 = vmatprep.subr.mxu0 0.0
      %1421 = vmatpush1.msra.mxu0 0.0
      %1422 = vmatprep.subr.mxu0 0.0
      %1423 = vmatpush1.msra.mxu0 0.0
      %1424 = vmatprep.subr.mxu0 0.0
      %1425 = vmatpush1.msra.mxu0 0.0
      %1426 = vmatprep.subr.mxu0 0.0
      %1427 = vmatpush1.msra.mxu0 0.0
      %1428 = vmatprep.subr.mxu0 0.0
      %1429 = vmatpush1.msra.mxu0 0.0
      %1430 = vmatprep.mubr.f32.mxu0 0.0
      %1431 = vmatmul.mubr.f32.gmra.mrb[0].mxu0 %v1364
      %v1432 = vpop.f32.mrb[0].mxu0
      %v1433 = vadd.f32 %v1359, %v1432
      %v1434 = vpop.f32.mrb[0].mxu0
      %v1435 = vadd.f32 %v1361, %v1434
      %1436 = vdwg.mxu0
      %1437 = vst [vmem:[%s244] sm:$0xff] %v1433
      %1438 = vst [vmem:[%s244 + $0x8] sm:$0xff] %v1435
      %p1439 = scmp.lt.s32.totalorder %s16, 1
      %s1440 = scalar_select %p1439, %s16, 1
      %s1441 = smul.addr %s1440, 2
      %s1442 = smul.addr %s1441, 8
      %s1443 = scalar_lea.vmem %s5, %s1442
      // Predicated region
      $region41: #{datrans_forward.2} parent=39 // pred_check
        %p1444 = pneg %p149
      $region42: #{datrans_forward.2} parent=39 // pred_check_branch
        %1446 = sbr.rel (%p1444) target = $region44
      $region43: #{datrans_forward.2} parent=39 // pred_region
        _
      $region44: #{datrans_forward.2} parent=39 // pred_fallthru
        _
    $region40: #{datrans_forward.2} parent=5 // pred_fallthru
      _
    %p1447 = scmp.le.s32.totalorder 2, %s11
    // Predicated region
    $region45: #{datrans_forward.2} parent=5 // pred_check
      %p1448 = pneg %p1447
    $region46: #{datrans_forward.2} parent=5 // pred_check_branch
      %1450 = sbr.rel (%p1448) target = $region48
    $region47: #{datrans_forward.2} parent=5 // pred_region
      %s1451 = ssub.s32 %s11, 2
      // Predicated region
      $region49: #{datrans_forward.2} parent=47 // pred_check
        %p1452 = pneg %p155
      $region50: #{datrans_forward.2} parent=47 // pred_check_branch
        %1454 = sbr.rel (%p1452) target = $region52
      $region51: #{datrans_forward.2} parent=47 // pred_region
        %p1455 = scmp.lt.s32.totalorder %s17, 1
        %s1456 = scalar_select %p1455, %s17, 1
        %s1457 = smul.addr %s1456, 2
        %s1458 = smul.addr %s1457, 8
        %s1459 = scalar_lea.vmem %s5, %s1458
      $region52: #{datrans_forward.2} parent=47 // pred_fallthru
        _
    $region48: #{datrans_forward.2} parent=5 // pred_fallthru
      _
  $region6: #{datrans_forward.2} parent=0 // loop_footer
    %s15 = sadd.s32 1, %s11
  $region7: #{datrans_forward.2} parent=0 // loop_footer_branch
    %10 = sbr.rel target = $region3
  $region8: #{datrans_forward.2} parent=0 // loop_exit
    _

</llo_original>
